<compile_context>
chip_gen: v7x
topology: tpu7x:2x2x1
jax: 0.10.0
libtpu: 0.0.40
codegen_flags: <defaults>
</compile_context>

<pallas_src>
import functools

import jax
import jax.numpy as jnp
from jax.experimental import pallas as pl
from jax.experimental.pallas import tpu as pltpu


def _attn_gated_kernel(x_ref, wab_ref, bab_ref, wc_ref, bc_ref, out_ref, *, d):
    x = x_ref[...]                                        # (tile_n, L) — one HBM read
    # Fused L -> 2D projection on the MXU (f32 accumulation).
    ab = (jnp.dot(x, wab_ref[...], preferred_element_type=jnp.float32)
          + bab_ref[...])                                 # (tile_n, 2D)
    a = jnp.tanh(ab[:, :d])                               # EUP tanh   (lane-aligned slice)
    b = jax.nn.sigmoid(ab[:, d:])                         # EUP sigmoid
    g = a * b                                             # sigmoid gate (VPU)
    logits = (jnp.dot(g, wc_ref[...], preferred_element_type=jnp.float32)
              + bc_ref[...])                              # (tile_n, n_classes)
    # Row-wise softmax over n_classes (== F.softmax(A, dim=1) for 2-D x).
    m = jnp.max(logits, axis=-1, keepdims=True)
    e = jnp.exp(logits - m)
    s = jnp.sum(e, axis=-1, keepdims=True)
    out_ref[...] = (e / s).astype(out_ref.dtype)


def attn_net_gated_forward(x, wa, ba, wb, bb, wc, bc, *, tile_n=512):
    """Fused Pallas forward for Attn_Net_Gated. Returns (A, x) like PyTorch."""
    n, l = x.shape
    d = wa.shape[1]
    n_classes = wc.shape[1]

    # Clamp the row tile to (padded) N so small inputs use a single grid step,
    # and keep it a multiple of 8 sublanes.
    n_rounded = max(8, -(-n // 8) * 8)
    tile_n = min(tile_n, n_rounded)
    tile_n = -(-tile_n // 8) * 8

    # Pad rows to a tile multiple (remainder handled explicitly, not dropped).
    n_pad = pl.cdiv(n, tile_n) * tile_n
    x_p = jnp.pad(x, ((0, n_pad - n), (0, 0))) if n_pad != n else x

    # Fuse the two L->D projections into one L->2D projection.
    wab = jnp.concatenate([wa, wb], axis=1)               # (L, 2D)
    bab = jnp.concatenate([ba, bb]).reshape(1, 2 * d)     # (1, 2D)
    bc2 = bc.reshape(1, n_classes)

    kernel = functools.partial(_attn_gated_kernel, d=d)

    a_pad = pl.pallas_call(
        kernel,
        out_shape=jax.ShapeDtypeStruct((n_pad, n_classes), x.dtype),
        grid_spec=pltpu.PrefetchScalarGridSpec(
            num_scalar_prefetch=0,
            grid=(n_pad // tile_n,),
            in_specs=[
                pl.BlockSpec((tile_n, l), lambda i: (i, 0)),        # x row tile
                pl.BlockSpec((l, 2 * d), lambda i: (0, 0)),         # [Wa|Wb] (resident)
                pl.BlockSpec((1, 2 * d), lambda i: (0, 0)),         # [ba;bb]
                pl.BlockSpec((d, n_classes), lambda i: (0, 0)),     # Wc (resident)
                pl.BlockSpec((1, n_classes), lambda i: (0, 0)),     # bc
            ],
            out_specs=pl.BlockSpec((tile_n, n_classes), lambda i: (i, 0)),
        ),
        compiler_params=pltpu.CompilerParams(
            dimension_semantics=("parallel",),            # row tiles are independent
        ),
    )(x_p, wab, bab, wc, bc2)

    A = a_pad[:n] if n_pad != n else a_pad
    # Second output of the PyTorch module is x, unchanged: return it directly
    # (no identity copy kernel / no extra HBM traffic).
    return A, x


def _reference_forward(x, wa, ba, wb, bb, wc, bc):
    a = jnp.tanh(x @ wa + ba)
    b = jax.nn.sigmoid(x @ wb + bb)
    A = (a * b) @ wc + bc
    A = jax.nn.softmax(A, axis=1)
    return A, x


if __name__ == "__main__":
    key = jax.random.PRNGKey(0)
    # Small, TPU-friendly shapes: L, D multiples of 128; N not a tile multiple
    # on purpose to exercise the padding path.
    N, L, D = 500, 256, 128

    for n_classes in (1, 4):   # default n_classes=1, plus a case with a real softmax
        ks = jax.random.split(jax.random.fold_in(key, n_classes), 7)
        x = jax.random.normal(ks[0], (N, L), dtype=jnp.float32)
        wa = jax.random.normal(ks[1], (L, D), dtype=jnp.float32) * (1.0 / L ** 0.5)
        ba = jax.random.normal(ks[2], (D,), dtype=jnp.float32) * 0.1
        wb = jax.random.normal(ks[3], (L, D), dtype=jnp.float32) * (1.0 / L ** 0.5)
        bb = jax.random.normal(ks[4], (D,), dtype=jnp.float32) * 0.1
        wc = jax.random.normal(ks[5], (D, n_classes), dtype=jnp.float32) * (1.0 / D ** 0.5)
        bc = jax.random.normal(ks[6], (n_classes,), dtype=jnp.float32) * 0.1

        A, x_out = jax.jit(attn_net_gated_forward)(x, wa, ba, wb, bb, wc, bc)
        A = jax.block_until_ready(A)

        A_ref, _ = _reference_forward(x, wa, ba, wb, bb, wc, bc)

        assert A.shape == (N, n_classes)
        assert A.dtype == x.dtype
        assert x_out.shape == x.shape
        assert bool(jnp.allclose(x_out, x))
        err = float(jnp.max(jnp.abs(A - A_ref)))
        assert bool(jnp.allclose(A, A_ref, atol=2e-3, rtol=2e-3)), err

    print("KERNEL_OK")
</pallas_src>

<mosaic_0001>
module attributes {stable_mosaic.version = 11 : i64} {
  func.func @_attn_gated_kernel(%arg0: i32, %arg1: memref<504x256xf32, #tpu.memory_space<vmem>>, %arg2: memref<256x256xf32, #tpu.memory_space<vmem>>, %arg3: memref<1x256xf32, #tpu.memory_space<vmem>>, %arg4: memref<128x1xf32, #tpu.memory_space<vmem>>, %arg5: memref<1x1xf32, #tpu.memory_space<vmem>>, %arg6: memref<504x1xf32, #tpu.memory_space<vmem>>) attributes {dimension_semantics = [#tpu.dimension_semantics<parallel>], iteration_bounds = array<i64: 1>, scalar_prefetch = 0 : i64, scratch_operands = 0 : i64, tpu.core_type = #tpu.core_type<tc>, window_params = [{transform_indices = @transform_0, window_bounds = array<i64: 504, 256>}, {pipeline_mode = #tpu.pipeline_mode<synchronous>, transform_indices = @transform_1, window_bounds = array<i64: 256, 256>}, {pipeline_mode = #tpu.pipeline_mode<synchronous>, transform_indices = @transform_2, window_bounds = array<i64: 1, 256>}, {pipeline_mode = #tpu.pipeline_mode<synchronous>, transform_indices = @transform_3, window_bounds = array<i64: 128, 1>}, {pipeline_mode = #tpu.pipeline_mode<synchronous>, transform_indices = @transform_4, window_bounds = array<i64: 1, 1>}, {transform_indices = @transform_5, window_bounds = array<i64: 504, 1>}]} {
    %c0 = arith.constant 0 : index
    %c0_0 = arith.constant 0 : index
    %0 = vector.load %arg1[%c0, %c0_0] : memref<504x256xf32, #tpu.memory_space<vmem>>, vector<504x256xf32>
    %c0_1 = arith.constant 0 : index
    %c0_2 = arith.constant 0 : index
    %1 = vector.load %arg2[%c0_1, %c0_2] : memref<256x256xf32, #tpu.memory_space<vmem>>, vector<256x256xf32>
    %cst = arith.constant dense<0.000000e+00> : vector<504x256xf32>
    %2 = tpu.matmul %0, %1, %cst {dimension_numbers = #tpu.dot_dimension_numbers<[1], [0], [0], [1], [0, 0, 1, 1], [], []>} : vector<504x256xf32>, vector<256x256xf32>, vector<504x256xf32> -> vector<504x256xf32>
    %c0_3 = arith.constant 0 : index
    %c0_4 = arith.constant 0 : index
    %3 = vector.load %arg3[%c0_3, %c0_4] : memref<1x256xf32, #tpu.memory_space<vmem>>, vector<1x256xf32>
    %4 = vector.broadcast %3 : vector<1x256xf32> to vector<504x256xf32>
    %5 = arith.addf %2, %4 : vector<504x256xf32>
    %6 = vector.extract_strided_slice %5 {offsets = [0, 0], sizes = [504, 128], strides = [1, 1]} : vector<504x256xf32> to vector<504x128xf32>
    %7 = math.tanh %6 : vector<504x128xf32>
    %8 = vector.extract_strided_slice %5 {offsets = [0, 128], sizes = [504, 128], strides = [1, 1]} : vector<504x256xf32> to vector<504x128xf32>
    %9 = arith.negf %8 : vector<504x128xf32>
    %10 = math.exp %9 : vector<504x128xf32>
    %cst_5 = arith.constant 1.000000e+00 : f32
    %11 = vector.broadcast %cst_5 : f32 to vector<504x128xf32>
    %12 = arith.addf %11, %10 : vector<504x128xf32>
    %13 = arith.divf %11, %12 : vector<504x128xf32>
    %14 = arith.mulf %7, %13 : vector<504x128xf32>
    %c0_6 = arith.constant 0 : index
    %c0_7 = arith.constant 0 : index
    %15 = vector.load %arg4[%c0_6, %c0_7] : memref<128x1xf32, #tpu.memory_space<vmem>>, vector<128x1xf32>
    %cst_8 = arith.constant dense<0.000000e+00> : vector<504x1xf32>
    %16 = tpu.matmul %14, %15, %cst_8 {dimension_numbers = #tpu.dot_dimension_numbers<[1], [0], [0], [1], [0, 0, 1, 1], [], []>} : vector<504x128xf32>, vector<128x1xf32>, vector<504x1xf32> -> vector<504x1xf32>
    %c0_9 = arith.constant 0 : index
    %c0_10 = arith.constant 0 : index
    %17 = vector.load %arg5[%c0_9, %c0_10] : memref<1x1xf32, #tpu.memory_space<vmem>>, vector<1x1xf32>
    %18 = vector.broadcast %17 : vector<1x1xf32> to vector<504x1xf32>
    %19 = arith.addf %16, %18 : vector<504x1xf32>
    %cst_11 = arith.constant dense<0xFF800000> : vector<504xf32>
    %20 = vector.multi_reduction <maximumf>, %19, %cst_11 [1] : vector<504x1xf32> to vector<504xf32>
    %21 = vector.shape_cast %20 : vector<504xf32> to vector<504x1xf32>
    %22 = arith.subf %19, %21 : vector<504x1xf32>
    %23 = math.exp %22 : vector<504x1xf32>
    %cst_12 = arith.constant dense<0.000000e+00> : vector<504xf32>
    %24 = vector.multi_reduction <add>, %23, %cst_12 [1] : vector<504x1xf32> to vector<504xf32>
    %25 = vector.shape_cast %24 : vector<504xf32> to vector<504x1xf32>
    %26 = arith.divf %23, %25 : vector<504x1xf32>
    %c0_13 = arith.constant 0 : index
    %c0_14 = arith.constant 0 : index
    %27 = vector.load %arg6[%c0_13, %c0_14] : memref<504x1xf32, #tpu.memory_space<vmem>>, vector<504x1xf32>
    tpu.vector_store %arg6[%c0_13, %c0_14], %26 {strides = array<i32>} : memref<504x1xf32, #tpu.memory_space<vmem>>, vector<504x1xf32>,
    return
  }
  func.func @transform_0(%arg0: i32) -> (i32, i32) {
    %c0_i32 = arith.constant 0 : i32
    %c0_i32_0 = arith.constant 0 : i32
    return %arg0, %c0_i32 : i32, i32
  }
  func.func @transform_1(%arg0: i32) -> (i32, i32) {
    %c0_i32 = arith.constant 0 : i32
    %c0_i32_0 = arith.constant 0 : i32
    %c0_i32_1 = arith.constant 0 : i32
    return %c0_i32, %c0_i32_0 : i32, i32
  }
  func.func @transform_2(%arg0: i32) -> (i32, i32) {
    %c0_i32 = arith.constant 0 : i32
    %c0_i32_0 = arith.constant 0 : i32
    %c0_i32_1 = arith.constant 0 : i32
    return %c0_i32, %c0_i32_0 : i32, i32
  }
  func.func @transform_3(%arg0: i32) -> (i32, i32) {
    %c0_i32 = arith.constant 0 : i32
    %c0_i32_0 = arith.constant 0 : i32
    %c0_i32_1 = arith.constant 0 : i32
    return %c0_i32, %c0_i32_0 : i32, i32
  }
  func.func @transform_4(%arg0: i32) -> (i32, i32) {
    %c0_i32 = arith.constant 0 : i32
    %c0_i32_0 = arith.constant 0 : i32
    %c0_i32_1 = arith.constant 0 : i32
    return %c0_i32, %c0_i32_0 : i32, i32
  }
  func.func @transform_5(%arg0: i32) -> (i32, i32) {
    %c0_i32 = arith.constant 0 : i32
    %c0_i32_0 = arith.constant 0 : i32
    return %arg0, %c0_i32 : i32, i32
  }
}

</mosaic_0001>

<llo_original>
// kernel: attn_net_gated_forward.1
$region0: #{attn_net_gated_forward.1}
  #allocation0 [shape = 'u32[]', space=smem, size = 0x4, offset = 0x4, fixed_abs, tag = 'smem constant byte address 0x4 - core index']
  #allocation1 [shape = 'u32[144,128]{1,0:T(1,128)}', space=vmem, size = 0x12000, scoped, tag = 'internal scratch']
  #allocation2 [shape = 'f32[1,1]{1,0:T(1,128)S(1)}', space=vmem, size = 0x200, scoped, tag = 'scoped memory for attn_net_gated_forward.1']
  %s0 = inlined_call_operand.vmem [shape: f32[504,256], index: 0, kind: input, shape index: {}]
  %s1 = inlined_call_operand.vmem [shape: f32[256,256], index: 1, kind: input, shape index: {}]
  %s2 = inlined_call_operand.vmem [shape: f32[1,256], index: 2, kind: input, shape index: {}]
  %s3 = inlined_call_operand.vmem [shape: f32[128,1], index: 3, kind: input, shape index: {}]
  %s4 = inlined_call_operand.<no memory space> [shape: f32[1,1], index: 4, kind: input, shape index: {}]
  %s5 = inlined_call_operand.vmem [shape: f32[504,1], index: 5, kind: output, shape index: {}]
  %s6 = sld [smem:[#allocation0]]
  $region30: #{attn_net_gated_forward.1} parent=0
    _
  %s8 = ssub.s32 1, %s6
  %s9 = scalar_select 0, %s8, %s6
  %v10 = vstv %s4
  %11 = vst [vmem:[#allocation2] sm:$0x1] %v10
  // Predicated region
  $region2: #{attn_net_gated_forward.1} parent=0 // pred_check
    _
  $region3: #{attn_net_gated_forward.1} parent=0 // pred_check_branch
    %13 = sbr.rel (0) target = $region5
  $region4: #{attn_net_gated_forward.1} parent=0 // pred_region
    _
  $region5: #{attn_net_gated_forward.1} parent=0 // pred_fallthru
    _
  // Predicated region
  $region6: #{attn_net_gated_forward.1} parent=0 // pred_check
    _
  $region7: #{attn_net_gated_forward.1} parent=0 // pred_check_branch
    %15 = sbr.rel (0) target = $region9
  $region8: #{attn_net_gated_forward.1} parent=0 // pred_region
    _
  $region9: #{attn_net_gated_forward.1} parent=0 // pred_fallthru
    _
  // Predicated region
  $region10: #{attn_net_gated_forward.1} parent=0 // pred_check
    _
  $region11: #{attn_net_gated_forward.1} parent=0 // pred_check_branch
    %17 = sbr.rel (0) target = $region13
  $region12: #{attn_net_gated_forward.1} parent=0 // pred_region
    _
  $region13: #{attn_net_gated_forward.1} parent=0 // pred_fallthru
    _
  // Predicated region
  $region14: #{attn_net_gated_forward.1} parent=0 // pred_check
    _
  $region15: #{attn_net_gated_forward.1} parent=0 // pred_check_branch
    %19 = sbr.rel (0) target = $region17
  $region16: #{attn_net_gated_forward.1} parent=0 // pred_region
    _
  $region17: #{attn_net_gated_forward.1} parent=0 // pred_fallthru
    _
  // Predicated region
  $region18: #{attn_net_gated_forward.1} parent=0 // pred_check
    _
  $region19: #{attn_net_gated_forward.1} parent=0 // pred_check_branch
    %21 = sbr.rel (0) target = $region21
  $region20: #{attn_net_gated_forward.1} parent=0 // pred_region
    _
  $region21: #{attn_net_gated_forward.1} parent=0 // pred_fallthru
    _
  %v22 = vld [vmem:[%s0] sm:$0xff]
  %v23 = vld [vmem:[%s0 + $0x8] sm:$0xff]
  %v24 = vld [vmem:[%s0 + $0x10] sm:$0xff]
  %v25 = vld [vmem:[%s0 + $0x18] sm:$0xff]
  %v26 = vld [vmem:[%s0 + $0x20] sm:$0xff]
  %v27 = vld [vmem:[%s0 + $0x28] sm:$0xff]
  %v28 = vld [vmem:[%s0 + $0x30] sm:$0xff]
  %v29 = vld [vmem:[%s0 + $0x38] sm:$0xff]
  %v30 = vld [vmem:[%s0 + $0x40] sm:$0xff]
  %v31 = vld [vmem:[%s0 + $0x48] sm:$0xff]
  %v32 = vld [vmem:[%s0 + $0x50] sm:$0xff]
  %v33 = vld [vmem:[%s0 + $0x58] sm:$0xff]
  %v34 = vld [vmem:[%s0 + $0x60] sm:$0xff]
  %v35 = vld [vmem:[%s0 + $0x68] sm:$0xff]
  %v36 = vld [vmem:[%s0 + $0x70] sm:$0xff]
  %v37 = vld [vmem:[%s0 + $0x78] sm:$0xff]
  %v38 = vld [vmem:[%s0 + $0x80] sm:$0xff]
  %v39 = vld [vmem:[%s0 + $0x88] sm:$0xff]
  %v40 = vld [vmem:[%s0 + $0x90] sm:$0xff]
  %v41 = vld [vmem:[%s0 + $0x98] sm:$0xff]
  %v42 = vld [vmem:[%s0 + $0xa0] sm:$0xff]
  %v43 = vld [vmem:[%s0 + $0xa8] sm:$0xff]
  %v44 = vld [vmem:[%s0 + $0xb0] sm:$0xff]
  %v45 = vld [vmem:[%s0 + $0xb8] sm:$0xff]
  %v46 = vld [vmem:[%s0 + $0xc0] sm:$0xff]
  %v47 = vld [vmem:[%s0 + $0xc8] sm:$0xff]
  %v48 = vld [vmem:[%s0 + $0xd0] sm:$0xff]
  %v49 = vld [vmem:[%s0 + $0xd8] sm:$0xff]
  %v50 = vld [vmem:[%s0 + $0xe0] sm:$0xff]
  %v51 = vld [vmem:[%s0 + $0xe8] sm:$0xff]
  %v52 = vld [vmem:[%s0 + $0xf0] sm:$0xff]
  %v53 = vld [vmem:[%s0 + $0xf8] sm:$0xff]
  %v54 = vld [vmem:[%s0 + $0x100] sm:$0xff]
  %v55 = vld [vmem:[%s0 + $0x108] sm:$0xff]
  %v56 = vld [vmem:[%s0 + $0x110] sm:$0xff]
  %v57 = vld [vmem:[%s0 + $0x118] sm:$0xff]
  %v58 = vld [vmem:[%s0 + $0x120] sm:$0xff]
  %v59 = vld [vmem:[%s0 + $0x128] sm:$0xff]
  %v60 = vld [vmem:[%s0 + $0x130] sm:$0xff]
  %v61 = vld [vmem:[%s0 + $0x138] sm:$0xff]
  %v62 = vld [vmem:[%s0 + $0x140] sm:$0xff]
  %v63 = vld [vmem:[%s0 + $0x148] sm:$0xff]
  %v64 = vld [vmem:[%s0 + $0x150] sm:$0xff]
  %v65 = vld [vmem:[%s0 + $0x158] sm:$0xff]
  %v66 = vld [vmem:[%s0 + $0x160] sm:$0xff]
  %v67 = vld [vmem:[%s0 + $0x168] sm:$0xff]
  %v68 = vld [vmem:[%s0 + $0x170] sm:$0xff]
  %v69 = vld [vmem:[%s0 + $0x178] sm:$0xff]
  %v70 = vld [vmem:[%s0 + $0x180] sm:$0xff]
  %v71 = vld [vmem:[%s0 + $0x188] sm:$0xff]
  %v72 = vld [vmem:[%s0 + $0x190] sm:$0xff]
  %v73 = vld [vmem:[%s0 + $0x198] sm:$0xff]
  %v74 = vld [vmem:[%s0 + $0x1a0] sm:$0xff]
  %v75 = vld [vmem:[%s0 + $0x1a8] sm:$0xff]
  %v76 = vld [vmem:[%s0 + $0x1b0] sm:$0xff]
  %v77 = vld [vmem:[%s0 + $0x1b8] sm:$0xff]
  %v78 = vld [vmem:[%s0 + $0x1c0] sm:$0xff]
  %v79 = vld [vmem:[%s0 + $0x1c8] sm:$0xff]
  %v80 = vld [vmem:[%s0 + $0x1d0] sm:$0xff]
  %v81 = vld [vmem:[%s0 + $0x1d8] sm:$0xff]
  %v82 = vld [vmem:[%s0 + $0x1e0] sm:$0xff]
  %v83 = vld [vmem:[%s0 + $0x1e8] sm:$0xff]
  %v84 = vld [vmem:[%s0 + $0x1f0] sm:$0xff]
  %v85 = vld [vmem:[%s0 + $0x1f8] sm:$0xff]
  %v86 = vld [vmem:[%s0 + $0x200] sm:$0xff]
  %v87 = vld [vmem:[%s0 + $0x208] sm:$0xff]
  %v88 = vld [vmem:[%s0 + $0x210] sm:$0xff]
  %v89 = vld [vmem:[%s0 + $0x218] sm:$0xff]
  %v90 = vld [vmem:[%s0 + $0x220] sm:$0xff]
  %v91 = vld [vmem:[%s0 + $0x228] sm:$0xff]
  %v92 = vld [vmem:[%s0 + $0x230] sm:$0xff]
  %v93 = vld [vmem:[%s0 + $0x238] sm:$0xff]
  %v94 = vld [vmem:[%s0 + $0x240] sm:$0xff]
  %v95 = vld [vmem:[%s0 + $0x248] sm:$0xff]
  %v96 = vld [vmem:[%s0 + $0x250] sm:$0xff]
  %v97 = vld [vmem:[%s0 + $0x258] sm:$0xff]
  %v98 = vld [vmem:[%s0 + $0x260] sm:$0xff]
  %v99 = vld [vmem:[%s0 + $0x268] sm:$0xff]
  %v100 = vld [vmem:[%s0 + $0x270] sm:$0xff]
  %v101 = vld [vmem:[%s0 + $0x278] sm:$0xff]
  %v102 = vld [vmem:[%s0 + $0x280] sm:$0xff]
  %v103 = vld [vmem:[%s0 + $0x288] sm:$0xff]
  %v104 = vld [vmem:[%s0 + $0x290] sm:$0xff]
  %v105 = vld [vmem:[%s0 + $0x298] sm:$0xff]
  %v106 = vld [vmem:[%s0 + $0x2a0] sm:$0xff]
  %v107 = vld [vmem:[%s0 + $0x2a8] sm:$0xff]
  %v108 = vld [vmem:[%s0 + $0x2b0] sm:$0xff]
  %v109 = vld [vmem:[%s0 + $0x2b8] sm:$0xff]
  %v110 = vld [vmem:[%s0 + $0x2c0] sm:$0xff]
  %v111 = vld [vmem:[%s0 + $0x2c8] sm:$0xff]
  %v112 = vld [vmem:[%s0 + $0x2d0] sm:$0xff]
  %v113 = vld [vmem:[%s0 + $0x2d8] sm:$0xff]
  %v114 = vld [vmem:[%s0 + $0x2e0] sm:$0xff]
  %v115 = vld [vmem:[%s0 + $0x2e8] sm:$0xff]
  %v116 = vld [vmem:[%s0 + $0x2f0] sm:$0xff]
  %v117 = vld [vmem:[%s0 + $0x2f8] sm:$0xff]
  %v118 = vld [vmem:[%s0 + $0x300] sm:$0xff]
  %v119 = vld [vmem:[%s0 + $0x308] sm:$0xff]
  %v120 = vld [vmem:[%s0 + $0x310] sm:$0xff]
  %v121 = vld [vmem:[%s0 + $0x318] sm:$0xff]
  %v122 = vld [vmem:[%s0 + $0x320] sm:$0xff]
  %v123 = vld [vmem:[%s0 + $0x328] sm:$0xff]
  %v124 = vld [vmem:[%s0 + $0x330] sm:$0xff]
  %v125 = vld [vmem:[%s0 + $0x338] sm:$0xff]
  %v126 = vld [vmem:[%s0 + $0x340] sm:$0xff]
  %v127 = vld [vmem:[%s0 + $0x348] sm:$0xff]
  %v128 = vld [vmem:[%s0 + $0x350] sm:$0xff]
  %v129 = vld [vmem:[%s0 + $0x358] sm:$0xff]
  %v130 = vld [vmem:[%s0 + $0x360] sm:$0xff]
  %v131 = vld [vmem:[%s0 + $0x368] sm:$0xff]
  %v132 = vld [vmem:[%s0 + $0x370] sm:$0xff]
  %v133 = vld [vmem:[%s0 + $0x378] sm:$0xff]
  %v134 = vld [vmem:[%s0 + $0x380] sm:$0xff]
  %v135 = vld [vmem:[%s0 + $0x388] sm:$0xff]
  %v136 = vld [vmem:[%s0 + $0x390] sm:$0xff]
  %v137 = vld [vmem:[%s0 + $0x398] sm:$0xff]
  %v138 = vld [vmem:[%s0 + $0x3a0] sm:$0xff]
  %v139 = vld [vmem:[%s0 + $0x3a8] sm:$0xff]
  %v140 = vld [vmem:[%s0 + $0x3b0] sm:$0xff]
  %v141 = vld [vmem:[%s0 + $0x3b8] sm:$0xff]
  %v142 = vld [vmem:[%s0 + $0x3c0] sm:$0xff]
  %v143 = vld [vmem:[%s0 + $0x3c8] sm:$0xff]
  %v144 = vld [vmem:[%s0 + $0x3d0] sm:$0xff]
  %v145 = vld [vmem:[%s0 + $0x3d8] sm:$0xff]
  %v146 = vld [vmem:[%s0 + $0x3e0] sm:$0xff]
  %v147 = vld [vmem:[%s0 + $0x3e8] sm:$0xff]
  %v148 = vld [vmem:[%s1] sm:$0xff]
  %v149 = vld [vmem:[%s1 + $0x8] sm:$0xff]
  %v150 = vld [vmem:[%s1 + $0x10] sm:$0xff]
  %v151 = vld [vmem:[%s1 + $0x18] sm:$0xff]
  %v152 = vld [vmem:[%s1 + $0x20] sm:$0xff]
  %v153 = vld [vmem:[%s1 + $0x28] sm:$0xff]
  %v154 = vld [vmem:[%s1 + $0x30] sm:$0xff]
  %v155 = vld [vmem:[%s1 + $0x38] sm:$0xff]
  %v156 = vld [vmem:[%s1 + $0x40] sm:$0xff]
  %v157 = vld [vmem:[%s1 + $0x48] sm:$0xff]
  %v158 = vld [vmem:[%s1 + $0x50] sm:$0xff]
  %v159 = vld [vmem:[%s1 + $0x58] sm:$0xff]
  %v160 = vld [vmem:[%s1 + $0x60] sm:$0xff]
  %v161 = vld [vmem:[%s1 + $0x68] sm:$0xff]
  %v162 = vld [vmem:[%s1 + $0x70] sm:$0xff]
  %v163 = vld [vmem:[%s1 + $0x78] sm:$0xff]
  %v164 = vld [vmem:[%s1 + $0x80] sm:$0xff]
  %v165 = vld [vmem:[%s1 + $0x88] sm:$0xff]
  %v166 = vld [vmem:[%s1 + $0x90] sm:$0xff]
  %v167 = vld [vmem:[%s1 + $0x98] sm:$0xff]
  %v168 = vld [vmem:[%s1 + $0xa0] sm:$0xff]
  %v169 = vld [vmem:[%s1 + $0xa8] sm:$0xff]
  %v170 = vld [vmem:[%s1 + $0xb0] sm:$0xff]
  %v171 = vld [vmem:[%s1 + $0xb8] sm:$0xff]
  %v172 = vld [vmem:[%s1 + $0xc0] sm:$0xff]
  %v173 = vld [vmem:[%s1 + $0xc8] sm:$0xff]
  %v174 = vld [vmem:[%s1 + $0xd0] sm:$0xff]
  %v175 = vld [vmem:[%s1 + $0xd8] sm:$0xff]
  %v176 = vld [vmem:[%s1 + $0xe0] sm:$0xff]
  %v177 = vld [vmem:[%s1 + $0xe8] sm:$0xff]
  %v178 = vld [vmem:[%s1 + $0xf0] sm:$0xff]
  %v179 = vld [vmem:[%s1 + $0xf8] sm:$0xff]
  %v180 = vld [vmem:[%s1 + $0x100] sm:$0xff]
  %v181 = vld [vmem:[%s1 + $0x108] sm:$0xff]
  %v182 = vld [vmem:[%s1 + $0x110] sm:$0xff]
  %v183 = vld [vmem:[%s1 + $0x118] sm:$0xff]
  %v184 = vld [vmem:[%s1 + $0x120] sm:$0xff]
  %v185 = vld [vmem:[%s1 + $0x128] sm:$0xff]
  %v186 = vld [vmem:[%s1 + $0x130] sm:$0xff]
  %v187 = vld [vmem:[%s1 + $0x138] sm:$0xff]
  %v188 = vld [vmem:[%s1 + $0x140] sm:$0xff]
  %v189 = vld [vmem:[%s1 + $0x148] sm:$0xff]
  %v190 = vld [vmem:[%s1 + $0x150] sm:$0xff]
  %v191 = vld [vmem:[%s1 + $0x158] sm:$0xff]
  %v192 = vld [vmem:[%s1 + $0x160] sm:$0xff]
  %v193 = vld [vmem:[%s1 + $0x168] sm:$0xff]
  %v194 = vld [vmem:[%s1 + $0x170] sm:$0xff]
  %v195 = vld [vmem:[%s1 + $0x178] sm:$0xff]
  %v196 = vld [vmem:[%s1 + $0x180] sm:$0xff]
  %v197 = vld [vmem:[%s1 + $0x188] sm:$0xff]
  %v198 = vld [vmem:[%s1 + $0x190] sm:$0xff]
  %v199 = vld [vmem:[%s1 + $0x198] sm:$0xff]
  %v200 = vld [vmem:[%s1 + $0x1a0] sm:$0xff]
  %v201 = vld [vmem:[%s1 + $0x1a8] sm:$0xff]
  %v202 = vld [vmem:[%s1 + $0x1b0] sm:$0xff]
  %v203 = vld [vmem:[%s1 + $0x1b8] sm:$0xff]
  %v204 = vld [vmem:[%s1 + $0x1c0] sm:$0xff]
  %v205 = vld [vmem:[%s1 + $0x1c8] sm:$0xff]
  %v206 = vld [vmem:[%s1 + $0x1d0] sm:$0xff]
  %v207 = vld [vmem:[%s1 + $0x1d8] sm:$0xff]
  %v208 = vld [vmem:[%s1 + $0x1e0] sm:$0xff]
  %v209 = vld [vmem:[%s1 + $0x1e8] sm:$0xff]
  %v210 = vld [vmem:[%s1 + $0x1f0] sm:$0xff]
  %v211 = vld [vmem:[%s1 + $0x1f8] sm:$0xff]
  %v212 = vld [vmem:[%s2] sm:$0x3]
  %v214 = vlaneseq
  %v215 = vshrl.u32 %v214, 7
  %v216 = vsub.s32 0, %v215
  %v217 = vrot.slane %v212, %v216
  %v218 = vlaneseq
  %v219 = vshrl.u32 %v218, 7
  %v220 = vsub.s32 1, %v219
  %v221 = vrot.slane %v212, %v220
  %224 = vmatprep.subr.mxu0 %v149
  %225 = vmatpush1.msra.mxu0 %v148
  %226 = vmatprep.subr.mxu0 %v151
  %227 = vmatpush1.msra.mxu0 %v150
  %228 = vmatprep.subr.mxu0 %v153
  %229 = vmatpush1.msra.mxu0 %v152
  %230 = vmatprep.subr.mxu0 %v155
  %231 = vmatpush1.msra.mxu0 %v154
  %232 = vmatprep.subr.mxu0 %v157
  %233 = vmatpush1.msra.mxu0 %v156
  %234 = vmatprep.subr.mxu0 %v159
  %235 = vmatpush1.msra.mxu0 %v158
  %236 = vmatprep.subr.mxu0 %v161
  %237 = vmatpush1.msra.mxu0 %v160
  %238 = vmatprep.subr.mxu0 %v163
  %239 = vmatpush1.msra.mxu0 %v162
  %240 = vmatprep.subr.mxu0 %v165
  %241 = vmatpush1.msra.mxu0 %v164
  %242 = vmatprep.subr.mxu0 %v167
  %243 = vmatpush1.msra.mxu0 %v166
  %244 = vmatprep.subr.mxu0 %v169
  %245 = vmatpush1.msra.mxu0 %v168
  %246 = vmatprep.subr.mxu0 %v171
  %247 = vmatpush1.msra.mxu0 %v170
  %248 = vmatprep.subr.mxu0 %v173
  %249 = vmatpush1.msra.mxu0 %v172
  %250 = vmatprep.subr.mxu0 %v175
  %251 = vmatpush1.msra.mxu0 %v174
  %252 = vmatprep.subr.mxu0 %v177
  %253 = vmatpush1.msra.mxu0 %v176
  %254 = vmatprep.subr.mxu0 %v179
  %255 = vmatpush1.msra.mxu0 %v178
  %256 = vmatprep.subr.mxu0 %v181
  %257 = vmatpush1.msra.mxu0 %v180
  %258 = vmatprep.subr.mxu0 %v183
  %259 = vmatpush1.msra.mxu0 %v182
  %260 = vmatprep.subr.mxu0 %v185
  %261 = vmatpush1.msra.mxu0 %v184
  %262 = vmatprep.subr.mxu0 %v187
  %263 = vmatpush1.msra.mxu0 %v186
  %264 = vmatprep.subr.mxu0 %v189
  %265 = vmatpush1.msra.mxu0 %v188
  %266 = vmatprep.subr.mxu0 %v191
  %267 = vmatpush1.msra.mxu0 %v190
  %268 = vmatprep.subr.mxu0 %v193
  %269 = vmatpush1.msra.mxu0 %v192
  %270 = vmatprep.subr.mxu0 %v195
  %271 = vmatpush1.msra.mxu0 %v194
  %272 = vmatprep.subr.mxu0 %v197
  %273 = vmatpush1.msra.mxu0 %v196
  %274 = vmatprep.subr.mxu0 %v199
  %275 = vmatpush1.msra.mxu0 %v198
  %276 = vmatprep.subr.mxu0 %v201
  %277 = vmatpush1.msra.mxu0 %v200
  %278 = vmatprep.subr.mxu0 %v203
  %279 = vmatpush1.msra.mxu0 %v202
  %280 = vmatprep.subr.mxu0 %v205
  %281 = vmatpush1.msra.mxu0 %v204
  %282 = vmatprep.subr.mxu0 %v207
  %283 = vmatpush1.msra.mxu0 %v206
  %284 = vmatprep.subr.mxu0 %v209
  %285 = vmatpush1.msra.mxu0 %v208
  %286 = vmatprep.subr.mxu0 %v211
  %287 = vmatpush1.msra.mxu0 %v210
  %288 = vmatprep.mubr.f32.mxu0 %v23
  %289 = vmatmul.mubr.f32.gmra.mrb[0].mxu0 %v22
  %v290 = vpop.f32.mrb[0].mxu0
  %v291 = vadd.f32 %v217, %v290
  %v292 = vpop.f32.mrb[0].mxu0
  %v293 = vadd.f32 %v221, %v292
  %294 = vmatprep.mubr.f32.mxu0 %v25
  %295 = vmatmul.mubr.f32.gmra.mrb[0].mxu0 %v24
  %v296 = vpop.f32.mrb[0].mxu0
  %v297 = vadd.f32 %v217, %v296
  %v298 = vpop.f32.mrb[0].mxu0
  %v299 = vadd.f32 %v221, %v298
  %300 = vmatprep.mubr.f32.mxu0 %v27
  %301 = vmatmul.mubr.f32.gmra.mrb[0].mxu0 %v26
  %v302 = vpop.f32.mrb[0].mxu0
  %v303 = vadd.f32 %v217, %v302
  %v304 = vpop.f32.mrb[0].mxu0
  %v305 = vadd.f32 %v221, %v304
  %306 = vmatprep.mubr.f32.mxu0 %v29
  %307 = vmatmul.mubr.f32.gmra.mrb[0].mxu0 %v28
  %v308 = vpop.f32.mrb[0].mxu0
  %v309 = vadd.f32 %v217, %v308
  %v310 = vpop.f32.mrb[0].mxu0
  %v311 = vadd.f32 %v221, %v310
  %312 = vmatprep.mubr.f32.mxu0 %v31
  %313 = vmatmul.mubr.f32.gmra.mrb[0].mxu0 %v30
  %v314 = vpop.f32.mrb[0].mxu0
  %v315 = vadd.f32 %v217, %v314
  %v316 = vpop.f32.mrb[0].mxu0
  %v317 = vadd.f32 %v221, %v316
  %318 = vmatprep.mubr.f32.mxu0 %v33
  %319 = vmatmul.mubr.f32.gmra.mrb[0].mxu0 %v32
  %v320 = vpop.f32.mrb[0].mxu0
  %v321 = vadd.f32 %v217, %v320
  %v322 = vpop.f32.mrb[0].mxu0
  %v323 = vadd.f32 %v221, %v322
  %324 = vmatprep.mubr.f32.mxu0 %v35
  %325 = vmatmul.mubr.f32.gmra.mrb[0].mxu0 %v34
  %v326 = vpop.f32.mrb[0].mxu0
  %v327 = vadd.f32 %v217, %v326
  %v328 = vpop.f32.mrb[0].mxu0
  %v329 = vadd.f32 %v221, %v328
  %330 = vmatprep.mubr.f32.mxu0 %v37
  %331 = vmatmul.mubr.f32.gmra.mrb[0].mxu0 %v36
  %v332 = vpop.f32.mrb[0].mxu0
  %v333 = vadd.f32 %v217, %v332
  %v334 = vpop.f32.mrb[0].mxu0
  %v335 = vadd.f32 %v221, %v334
  %336 = vmatprep.mubr.f32.mxu0 %v39
  %337 = vmatmul.mubr.f32.gmra.mrb[0].mxu0 %v38
  %v338 = vpop.f32.mrb[0].mxu0
  %v339 = vadd.f32 %v217, %v338
  %v340 = vpop.f32.mrb[0].mxu0
  %v341 = vadd.f32 %v221, %v340
  %342 = vmatprep.mubr.f32.mxu0 %v41
  %343 = vmatmul.mubr.f32.gmra.mrb[0].mxu0 %v40
  %v344 = vpop.f32.mrb[0].mxu0
  %v345 = vadd.f32 %v217, %v344
  %v346 = vpop.f32.mrb[0].mxu0
  %v347 = vadd.f32 %v221, %v346
  %348 = vmatprep.mubr.f32.mxu0 %v43
  %349 = vmatmul.mubr.f32.gmra.mrb[0].mxu0 %v42
  %v350 = vpop.f32.mrb[0].mxu0
  %v351 = vadd.f32 %v217, %v350
  %v352 = vpop.f32.mrb[0].mxu0
  %v353 = vadd.f32 %v221, %v352
  %354 = vmatprep.mubr.f32.mxu0 %v45
  %355 = vmatmul.mubr.f32.gmra.mrb[0].mxu0 %v44
  %v356 = vpop.f32.mrb[0].mxu0
  %v357 = vadd.f32 %v217, %v356
  %v358 = vpop.f32.mrb[0].mxu0
  %v359 = vadd.f32 %v221, %v358
  %360 = vmatprep.mubr.f32.mxu0 %v47
  %361 = vmatmul.mubr.f32.gmra.mrb[0].mxu0 %v46
  %v362 = vpop.f32.mrb[0].mxu0
  %v363 = vadd.f32 %v217, %v362
  %v364 = vpop.f32.mrb[0].mxu0
  %v365 = vadd.f32 %v221, %v364
  %366 = vmatprep.mubr.f32.mxu0 %v49
  %367 = vmatmul.mubr.f32.gmra.mrb[0].mxu0 %v48
  %v368 = vpop.f32.mrb[0].mxu0
  %v369 = vadd.f32 %v217, %v368
  %v370 = vpop.f32.mrb[0].mxu0
  %v371 = vadd.f32 %v221, %v370
  %372 = vmatprep.mubr.f32.mxu0 %v51
  %373 = vmatmul.mubr.f32.gmra.mrb[0].mxu0 %v50
  %v374 = vpop.f32.mrb[0].mxu0
  %v375 = vadd.f32 %v217, %v374
  %v376 = vpop.f32.mrb[0].mxu0
  %v377 = vadd.f32 %v221, %v376
  %378 = vmatprep.mubr.f32.mxu0 %v53
  %379 = vmatmul.mubr.f32.gmra.mrb[0].mxu0 %v52
  %v380 = vpop.f32.mrb[0].mxu0
  %v381 = vadd.f32 %v217, %v380
  %v382 = vpop.f32.mrb[0].mxu0
  %v383 = vadd.f32 %v221, %v382
  %384 = vmatprep.mubr.f32.mxu0 %v55
  %385 = vmatmul.mubr.f32.gmra.mrb[0].mxu0 %v54
  %v386 = vpop.f32.mrb[0].mxu0
  %v387 = vadd.f32 %v217, %v386
  %v388 = vpop.f32.mrb[0].mxu0
  %v389 = vadd.f32 %v221, %v388
  %390 = vmatprep.mubr.f32.mxu0 %v57
  %391 = vmatmul.mubr.f32.gmra.mrb[0].mxu0 %v56
  %v392 = vpop.f32.mrb[0].mxu0
  %v393 = vadd.f32 %v217, %v392
  %v394 = vpop.f32.mrb[0].mxu0
  %v395 = vadd.f32 %v221, %v394
  %396 = vmatprep.mubr.f32.mxu0 %v59
  %397 = vmatmul.mubr.f32.gmra.mrb[0].mxu0 %v58
  %v398 = vpop.f32.mrb[0].mxu0
  %v399 = vadd.f32 %v217, %v398
  %v400 = vpop.f32.mrb[0].mxu0
  %v401 = vadd.f32 %v221, %v400
  %402 = vmatprep.mubr.f32.mxu0 %v61
  %403 = vmatmul.mubr.f32.gmra.mrb[0].mxu0 %v60
  %v404 = vpop.f32.mrb[0].mxu0
  %v405 = vadd.f32 %v217, %v404
  %v406 = vpop.f32.mrb[0].mxu0
  %v407 = vadd.f32 %v221, %v406
  %408 = vmatprep.mubr.f32.mxu0 %v63
  %409 = vmatmul.mubr.f32.gmra.mrb[0].mxu0 %v62
  %v410 = vpop.f32.mrb[0].mxu0
  %v411 = vadd.f32 %v217, %v410
  %v412 = vpop.f32.mrb[0].mxu0
  %v413 = vadd.f32 %v221, %v412
  %414 = vmatprep.mubr.f32.mxu0 %v65
  %415 = vmatmul.mubr.f32.gmra.mrb[0].mxu0 %v64
  %v416 = vpop.f32.mrb[0].mxu0
  %v417 = vadd.f32 %v217, %v416
  %v418 = vpop.f32.mrb[0].mxu0
  %v419 = vadd.f32 %v221, %v418
  %420 = vmatprep.mubr.f32.mxu0 %v67
  %421 = vmatmul.mubr.f32.gmra.mrb[0].mxu0 %v66
  %v422 = vpop.f32.mrb[0].mxu0
  %v423 = vadd.f32 %v217, %v422
  %v424 = vpop.f32.mrb[0].mxu0
  %v425 = vadd.f32 %v221, %v424
  %426 = vmatprep.mubr.f32.mxu0 %v69
  %427 = vmatmul.mubr.f32.gmra.mrb[0].mxu0 %v68
  %v428 = vpop.f32.mrb[0].mxu0
  %v429 = vadd.f32 %v217, %v428
  %v430 = vpop.f32.mrb[0].mxu0
  %v431 = vadd.f32 %v221, %v430
  %432 = vmatprep.mubr.f32.mxu0 %v71
  %433 = vmatmul.mubr.f32.gmra.mrb[0].mxu0 %v70
  %v434 = vpop.f32.mrb[0].mxu0
  %v435 = vadd.f32 %v217, %v434
  %v436 = vpop.f32.mrb[0].mxu0
  %v437 = vadd.f32 %v221, %v436
  %438 = vmatprep.mubr.f32.mxu0 %v73
  %439 = vmatmul.mubr.f32.gmra.mrb[0].mxu0 %v72
  %v440 = vpop.f32.mrb[0].mxu0
  %v441 = vadd.f32 %v217, %v440
  %v442 = vpop.f32.mrb[0].mxu0
  %v443 = vadd.f32 %v221, %v442
  %444 = vmatprep.mubr.f32.mxu0 %v75
  %445 = vmatmul.mubr.f32.gmra.mrb[0].mxu0 %v74
  %v446 = vpop.f32.mrb[0].mxu0
  %v447 = vadd.f32 %v217, %v446
  %v448 = vpop.f32.mrb[0].mxu0
  %v449 = vadd.f32 %v221, %v448
  %450 = vmatprep.mubr.f32.mxu0 %v77
  %451 = vmatmul.mubr.f32.gmra.mrb[0].mxu0 %v76
  %v452 = vpop.f32.mrb[0].mxu0
  %v453 = vadd.f32 %v217, %v452
  %v454 = vpop.f32.mrb[0].mxu0
  %v455 = vadd.f32 %v221, %v454
  %456 = vmatprep.mubr.f32.mxu0 %v79
  %457 = vmatmul.mubr.f32.gmra.mrb[0].mxu0 %v78
  %v458 = vpop.f32.mrb[0].mxu0
  %v459 = vadd.f32 %v217, %v458
  %v460 = vpop.f32.mrb[0].mxu0
  %v461 = vadd.f32 %v221, %v460
  %462 = vmatprep.mubr.f32.mxu0 %v81
  %463 = vmatmul.mubr.f32.gmra.mrb[0].mxu0 %v80
  %v464 = vpop.f32.mrb[0].mxu0
  %v465 = vadd.f32 %v217, %v464
  %v466 = vpop.f32.mrb[0].mxu0
  %v467 = vadd.f32 %v221, %v466
  %468 = vmatprep.mubr.f32.mxu0 %v83
  %469 = vmatmul.mubr.f32.gmra.mrb[0].mxu0 %v82
  %v470 = vpop.f32.mrb[0].mxu0
  %v471 = vadd.f32 %v217, %v470
  %v472 = vpop.f32.mrb[0].mxu0
  %v473 = vadd.f32 %v221, %v472
  %474 = vmatprep.mubr.f32.mxu0 %v85
  %475 = vmatmul.mubr.f32.gmra.mrb[0].mxu0 %v84
  %v476 = vpop.f32.mrb[0].mxu0
  %v477 = vadd.f32 %v217, %v476
  %v478 = vpop.f32.mrb[0].mxu0
  %v479 = vadd.f32 %v221, %v478
  %480 = vmatprep.mubr.f32.mxu0 %v87
  %481 = vmatmul.mubr.f32.gmra.mrb[0].mxu0 %v86
  %v482 = vpop.f32.mrb[0].mxu0
  %v483 = vadd.f32 %v217, %v482
  %v484 = vpop.f32.mrb[0].mxu0
  %v485 = vadd.f32 %v221, %v484
  %486 = vmatprep.mubr.f32.mxu0 %v89
  %487 = vmatmul.mubr.f32.gmra.mrb[0].mxu0 %v88
  %v488 = vpop.f32.mrb[0].mxu0
  %v489 = vadd.f32 %v217, %v488
  %v490 = vpop.f32.mrb[0].mxu0
  %v491 = vadd.f32 %v221, %v490
  %492 = vmatprep.mubr.f32.mxu0 %v91
  %493 = vmatmul.mubr.f32.gmra.mrb[0].mxu0 %v90
  %v494 = vpop.f32.mrb[0].mxu0
  %v495 = vadd.f32 %v217, %v494
  %v496 = vpop.f32.mrb[0].mxu0
  %v497 = vadd.f32 %v221, %v496
  %498 = vmatprep.mubr.f32.mxu0 %v93
  %499 = vmatmul.mubr.f32.gmra.mrb[0].mxu0 %v92
  %v500 = vpop.f32.mrb[0].mxu0
  %v501 = vadd.f32 %v217, %v500
  %v502 = vpop.f32.mrb[0].mxu0
  %v503 = vadd.f32 %v221, %v502
  %504 = vmatprep.mubr.f32.mxu0 %v95
  %505 = vmatmul.mubr.f32.gmra.mrb[0].mxu0 %v94
  %v506 = vpop.f32.mrb[0].mxu0
  %v507 = vadd.f32 %v217, %v506
  %v508 = vpop.f32.mrb[0].mxu0
  %v509 = vadd.f32 %v221, %v508
  %510 = vmatprep.mubr.f32.mxu0 %v97
  %511 = vmatmul.mubr.f32.gmra.mrb[0].mxu0 %v96
  %v512 = vpop.f32.mrb[0].mxu0
  %v513 = vadd.f32 %v217, %v512
  %v514 = vpop.f32.mrb[0].mxu0
  %v515 = vadd.f32 %v221, %v514
  %516 = vmatprep.mubr.f32.mxu0 %v99
  %517 = vmatmul.mubr.f32.gmra.mrb[0].mxu0 %v98
  %v518 = vpop.f32.mrb[0].mxu0
  %v519 = vadd.f32 %v217, %v518
  %v520 = vpop.f32.mrb[0].mxu0
  %v521 = vadd.f32 %v221, %v520
  %522 = vmatprep.mubr.f32.mxu0 %v101
  %523 = vmatmul.mubr.f32.gmra.mrb[0].mxu0 %v100
  %v524 = vpop.f32.mrb[0].mxu0
  %v525 = vadd.f32 %v217, %v524
  %v526 = vpop.f32.mrb[0].mxu0
  %v527 = vadd.f32 %v221, %v526
  %528 = vmatprep.mubr.f32.mxu0 %v103
  %529 = vmatmul.mubr.f32.gmra.mrb[0].mxu0 %v102
  %v530 = vpop.f32.mrb[0].mxu0
  %v531 = vadd.f32 %v217, %v530
  %v532 = vpop.f32.mrb[0].mxu0
  %v533 = vadd.f32 %v221, %v532
  %534 = vmatprep.mubr.f32.mxu0 %v105
  %535 = vmatmul.mubr.f32.gmra.mrb[0].mxu0 %v104
  %v536 = vpop.f32.mrb[0].mxu0
  %v537 = vadd.f32 %v217, %v536
  %v538 = vpop.f32.mrb[0].mxu0
  %v539 = vadd.f32 %v221, %v538
  %540 = vmatprep.mubr.f32.mxu0 %v107
  %541 = vmatmul.mubr.f32.gmra.mrb[0].mxu0 %v106
  %v542 = vpop.f32.mrb[0].mxu0
  %v543 = vadd.f32 %v217, %v542
  %v544 = vpop.f32.mrb[0].mxu0
  %v545 = vadd.f32 %v221, %v544
  %546 = vmatprep.mubr.f32.mxu0 %v109
  %547 = vmatmul.mubr.f32.gmra.mrb[0].mxu0 %v108
  %v548 = vpop.f32.mrb[0].mxu0
  %v549 = vadd.f32 %v217, %v548
  %v550 = vpop.f32.mrb[0].mxu0
  %v551 = vadd.f32 %v221, %v550
  %552 = vmatprep.mubr.f32.mxu0 %v111
  %553 = vmatmul.mubr.f32.gmra.mrb[0].mxu0 %v110
  %v554 = vpop.f32.mrb[0].mxu0
  %v555 = vadd.f32 %v217, %v554
  %v556 = vpop.f32.mrb[0].mxu0
  %v557 = vadd.f32 %v221, %v556
  %558 = vmatprep.mubr.f32.mxu0 %v113
  %559 = vmatmul.mubr.f32.gmra.mrb[0].mxu0 %v112
  %v560 = vpop.f32.mrb[0].mxu0
  %v561 = vadd.f32 %v217, %v560
  %v562 = vpop.f32.mrb[0].mxu0
  %v563 = vadd.f32 %v221, %v562
  %564 = vmatprep.mubr.f32.mxu0 %v115
  %565 = vmatmul.mubr.f32.gmra.mrb[0].mxu0 %v114
  %v566 = vpop.f32.mrb[0].mxu0
  %v567 = vadd.f32 %v217, %v566
  %v568 = vpop.f32.mrb[0].mxu0
  %v569 = vadd.f32 %v221, %v568
  %570 = vmatprep.mubr.f32.mxu0 %v117
  %571 = vmatmul.mubr.f32.gmra.mrb[0].mxu0 %v116
  %v572 = vpop.f32.mrb[0].mxu0
  %v573 = vadd.f32 %v217, %v572
  %v574 = vpop.f32.mrb[0].mxu0
  %v575 = vadd.f32 %v221, %v574
  %576 = vmatprep.mubr.f32.mxu0 %v119
  %577 = vmatmul.mubr.f32.gmra.mrb[0].mxu0 %v118
  %v578 = vpop.f32.mrb[0].mxu0
  %v579 = vadd.f32 %v217, %v578
  %v580 = vpop.f32.mrb[0].mxu0
  %v581 = vadd.f32 %v221, %v580
  %582 = vmatprep.mubr.f32.mxu0 %v121
  %583 = vmatmul.mubr.f32.gmra.mrb[0].mxu0 %v120
  %v584 = vpop.f32.mrb[0].mxu0
  %v585 = vadd.f32 %v217, %v584
  %v586 = vpop.f32.mrb[0].mxu0
  %v587 = vadd.f32 %v221, %v586
  %588 = vmatprep.mubr.f32.mxu0 %v123
  %589 = vmatmul.mubr.f32.gmra.mrb[0].mxu0 %v122
  %v590 = vpop.f32.mrb[0].mxu0
  %v591 = vadd.f32 %v217, %v590
  %v592 = vpop.f32.mrb[0].mxu0
  %v593 = vadd.f32 %v221, %v592
  %594 = vmatprep.mubr.f32.mxu0 %v125
  %595 = vmatmul.mubr.f32.gmra.mrb[0].mxu0 %v124
  %v596 = vpop.f32.mrb[0].mxu0
  %v597 = vadd.f32 %v217, %v596
  %v598 = vpop.f32.mrb[0].mxu0
  %v599 = vadd.f32 %v221, %v598
  %600 = vmatprep.mubr.f32.mxu0 %v127
  %601 = vmatmul.mubr.f32.gmra.mrb[0].mxu0 %v126
  %v602 = vpop.f32.mrb[0].mxu0
  %v603 = vadd.f32 %v217, %v602
  %v604 = vpop.f32.mrb[0].mxu0
  %v605 = vadd.f32 %v221, %v604
  %606 = vmatprep.mubr.f32.mxu0 %v129
  %607 = vmatmul.mubr.f32.gmra.mrb[0].mxu0 %v128
  %v608 = vpop.f32.mrb[0].mxu0
  %v609 = vadd.f32 %v217, %v608
  %v610 = vpop.f32.mrb[0].mxu0
  %v611 = vadd.f32 %v221, %v610
  %612 = vmatprep.mubr.f32.mxu0 %v131
  %613 = vmatmul.mubr.f32.gmra.mrb[0].mxu0 %v130
  %v614 = vpop.f32.mrb[0].mxu0
  %v615 = vadd.f32 %v217, %v614
  %v616 = vpop.f32.mrb[0].mxu0
  %v617 = vadd.f32 %v221, %v616
  %618 = vmatprep.mubr.f32.mxu0 %v133
  %619 = vmatmul.mubr.f32.gmra.mrb[0].mxu0 %v132
  %v620 = vpop.f32.mrb[0].mxu0
  %v621 = vadd.f32 %v217, %v620
  %v622 = vpop.f32.mrb[0].mxu0
  %v623 = vadd.f32 %v221, %v622
  %624 = vmatprep.mubr.f32.mxu0 %v135
  %625 = vmatmul.mubr.f32.gmra.mrb[0].mxu0 %v134
  %v626 = vpop.f32.mrb[0].mxu0
  %v627 = vadd.f32 %v217, %v626
  %v628 = vpop.f32.mrb[0].mxu0
  %v629 = vadd.f32 %v221, %v628
  %630 = vmatprep.mubr.f32.mxu0 %v137
  %631 = vmatmul.mubr.f32.gmra.mrb[0].mxu0 %v136
  %v632 = vpop.f32.mrb[0].mxu0
  %v633 = vadd.f32 %v217, %v632
  %v634 = vpop.f32.mrb[0].mxu0
  %v635 = vadd.f32 %v221, %v634
  %636 = vmatprep.mubr.f32.mxu0 %v139
  %637 = vmatmul.mubr.f32.gmra.mrb[0].mxu0 %v138
  %v638 = vpop.f32.mrb[0].mxu0
  %v639 = vadd.f32 %v217, %v638
  %v640 = vpop.f32.mrb[0].mxu0
  %v641 = vadd.f32 %v221, %v640
  %642 = vmatprep.mubr.f32.mxu0 %v141
  %643 = vmatmul.mubr.f32.gmra.mrb[0].mxu0 %v140
  %v644 = vpop.f32.mrb[0].mxu0
  %v645 = vadd.f32 %v217, %v644
  %v646 = vpop.f32.mrb[0].mxu0
  %v647 = vadd.f32 %v221, %v646
  %648 = vmatprep.mubr.f32.mxu0 %v143
  %649 = vmatmul.mubr.f32.gmra.mrb[0].mxu0 %v142
  %v650 = vpop.f32.mrb[0].mxu0
  %v651 = vadd.f32 %v217, %v650
  %v652 = vpop.f32.mrb[0].mxu0
  %v653 = vadd.f32 %v221, %v652
  %654 = vmatprep.mubr.f32.mxu0 %v145
  %655 = vmatmul.mubr.f32.gmra.mrb[0].mxu0 %v144
  %v656 = vpop.f32.mrb[0].mxu0
  %v657 = vadd.f32 %v217, %v656
  %v658 = vpop.f32.mrb[0].mxu0
  %v659 = vadd.f32 %v221, %v658
  %660 = vmatprep.mubr.f32.mxu0 %v147
  %661 = vmatmul.mubr.f32.gmra.mrb[0].mxu0 %v146
  %v662 = vpop.f32.mrb[0].mxu0
  %v663 = vadd.f32 %v217, %v662
  %v664 = vpop.f32.mrb[0].mxu0
  %v665 = vadd.f32 %v221, %v664
  %666 = vdwg.mxu0
  %v667 = vtanh.pop %v291
  %v668 = vtanh.pop %v297
  %v669 = vtanh.pop %v303
  %v670 = vtanh.pop %v309
  %v671 = vtanh.pop %v315
  %v672 = vtanh.pop %v321
  %v673 = vtanh.pop %v327
  %v674 = vtanh.pop %v333
  %v675 = vtanh.pop %v339
  %v676 = vtanh.pop %v345
  %v677 = vtanh.pop %v351
  %v678 = vtanh.pop %v357
  %v679 = vtanh.pop %v363
  %v680 = vtanh.pop %v369
  %v681 = vtanh.pop %v375
  %v682 = vtanh.pop %v381
  %v683 = vtanh.pop %v387
  %v684 = vtanh.pop %v393
  %v685 = vtanh.pop %v399
  %v686 = vtanh.pop %v405
  %v687 = vtanh.pop %v411
  %v688 = vtanh.pop %v417
  %v689 = vtanh.pop %v423
  %v690 = vtanh.pop %v429
  %v691 = vtanh.pop %v435
  %v692 = vtanh.pop %v441
  %v693 = vtanh.pop %v447
  %v694 = vtanh.pop %v453
  %v695 = vtanh.pop %v459
  %v696 = vtanh.pop %v465
  %v697 = vtanh.pop %v471
  %v698 = vtanh.pop %v477
  %v699 = vtanh.pop %v483
  %v700 = vtanh.pop %v489
  %v701 = vtanh.pop %v495
  %v702 = vtanh.pop %v501
  %v703 = vtanh.pop %v507
  %v704 = vtanh.pop %v513
  %v705 = vtanh.pop %v519
  %v706 = vtanh.pop %v525
  %v707 = vtanh.pop %v531
  %v708 = vtanh.pop %v537
  %v709 = vtanh.pop %v543
  %v710 = vtanh.pop %v549
  %v711 = vtanh.pop %v555
  %v712 = vtanh.pop %v561
  %v713 = vtanh.pop %v567
  %v714 = vtanh.pop %v573
  %v715 = vtanh.pop %v579
  %v716 = vtanh.pop %v585
  %v717 = vtanh.pop %v591
  %v718 = vtanh.pop %v597
  %v719 = vtanh.pop %v603
  %v720 = vtanh.pop %v609
  %v721 = vtanh.pop %v615
  %v722 = vtanh.pop %v621
  %v723 = vtanh.pop %v627
  %v724 = vtanh.pop %v633
  %v725 = vtanh.pop %v639
  %v726 = vtanh.pop %v645
  %v727 = vtanh.pop %v651
  %v728 = vtanh.pop %v657
  %v729 = vtanh.pop %v663
  %v730 = vxor.u32 %v293, 2147483648
  %v731 = vxor.u32 %v299, 2147483648
  %v732 = vxor.u32 %v305, 2147483648
  %v733 = vxor.u32 %v311, 2147483648
  %v734 = vxor.u32 %v317, 2147483648
  %v735 = vxor.u32 %v323, 2147483648
  %v736 = vxor.u32 %v329, 2147483648
  %v737 = vxor.u32 %v335, 2147483648
  %v738 = vxor.u32 %v341, 2147483648
  %v739 = vxor.u32 %v347, 2147483648
  %v740 = vxor.u32 %v353, 2147483648
  %v741 = vxor.u32 %v359, 2147483648
  %v742 = vxor.u32 %v365, 2147483648
  %v743 = vxor.u32 %v371, 2147483648
  %v744 = vxor.u32 %v377, 2147483648
  %v745 = vxor.u32 %v383, 2147483648
  %v746 = vxor.u32 %v389, 2147483648
  %v747 = vxor.u32 %v395, 2147483648
  %v748 = vxor.u32 %v401, 2147483648
  %v749 = vxor.u32 %v407, 2147483648
  %v750 = vxor.u32 %v413, 2147483648
  %v751 = vxor.u32 %v419, 2147483648
  %v752 = vxor.u32 %v425, 2147483648
  %v753 = vxor.u32 %v431, 2147483648
  %v754 = vxor.u32 %v437, 2147483648
  %v755 = vxor.u32 %v443, 2147483648
  %v756 = vxor.u32 %v449, 2147483648
  %v757 = vxor.u32 %v455, 2147483648
  %v758 = vxor.u32 %v461, 2147483648
  %v759 = vxor.u32 %v467, 2147483648
  %v760 = vxor.u32 %v473, 2147483648
  %v761 = vxor.u32 %v479, 2147483648
  %v762 = vxor.u32 %v485, 2147483648
  %v763 = vxor.u32 %v491, 2147483648
  %v764 = vxor.u32 %v497, 2147483648
  %v765 = vxor.u32 %v503, 2147483648
  %v766 = vxor.u32 %v509, 2147483648
  %v767 = vxor.u32 %v515, 2147483648
  %v768 = vxor.u32 %v521, 2147483648
  %v769 = vxor.u32 %v527, 2147483648
  %v770 = vxor.u32 %v533, 2147483648
  %v771 = vxor.u32 %v539, 2147483648
  %v772 = vxor.u32 %v545, 2147483648
  %v773 = vxor.u32 %v551, 2147483648
  %v774 = vxor.u32 %v557, 2147483648
  %v775 = vxor.u32 %v563, 2147483648
  %v776 = vxor.u32 %v569, 2147483648
  %v777 = vxor.u32 %v575, 2147483648
  %v778 = vxor.u32 %v581, 2147483648
  %v779 = vxor.u32 %v587, 2147483648
  %v780 = vxor.u32 %v593, 2147483648
  %v781 = vxor.u32 %v599, 2147483648
  %v782 = vxor.u32 %v605, 2147483648
  %v783 = vxor.u32 %v611, 2147483648
  %v784 = vxor.u32 %v617, 2147483648
  %v785 = vxor.u32 %v623, 2147483648
  %v786 = vxor.u32 %v629, 2147483648
  %v787 = vxor.u32 %v635, 2147483648
  %v788 = vxor.u32 %v641, 2147483648
  %v789 = vxor.u32 %v647, 2147483648
  %v790 = vxor.u32 %v653, 2147483648
  %v791 = vxor.u32 %v659, 2147483648
  %v792 = vxor.u32 %v665, 2147483648
  %v793 = vmul.f32 %v730, 1.442695
  %v794 = vpow.pop %v793
  %v795 = vmul.f32 %v731, 1.442695
  %v796 = vpow.pop %v795
  %v797 = vmul.f32 %v732, 1.442695
  %v798 = vpow.pop %v797
  %v799 = vmul.f32 %v733, 1.442695
  %v800 = vpow.pop %v799
  %v801 = vmul.f32 %v734, 1.442695
  %v802 = vpow.pop %v801
  %v803 = vmul.f32 %v735, 1.442695
  %v804 = vpow.pop %v803
  %v805 = vmul.f32 %v736, 1.442695
  %v806 = vpow.pop %v805
  %v807 = vmul.f32 %v737, 1.442695
  %v808 = vpow.pop %v807
  %v809 = vmul.f32 %v738, 1.442695
  %v810 = vpow.pop %v809
  %v811 = vmul.f32 %v739, 1.442695
  %v812 = vpow.pop %v811
  %v813 = vmul.f32 %v740, 1.442695
  %v814 = vpow.pop %v813
  %v815 = vmul.f32 %v741, 1.442695
  %v816 = vpow.pop %v815
  %v817 = vmul.f32 %v742, 1.442695
  %v818 = vpow.pop %v817
  %v819 = vmul.f32 %v743, 1.442695
  %v820 = vpow.pop %v819
  %v821 = vmul.f32 %v744, 1.442695
  %v822 = vpow.pop %v821
  %v823 = vmul.f32 %v745, 1.442695
  %v824 = vpow.pop %v823
  %v825 = vmul.f32 %v746, 1.442695
  %v826 = vpow.pop %v825
  %v827 = vmul.f32 %v747, 1.442695
  %v828 = vpow.pop %v827
  %v829 = vmul.f32 %v748, 1.442695
  %v830 = vpow.pop %v829
  %v831 = vmul.f32 %v749, 1.442695
  %v832 = vpow.pop %v831
  %v833 = vmul.f32 %v750, 1.442695
  %v834 = vpow.pop %v833
  %v835 = vmul.f32 %v751, 1.442695
  %v836 = vpow.pop %v835
  %v837 = vmul.f32 %v752, 1.442695
  %v838 = vpow.pop %v837
  %v839 = vmul.f32 %v753, 1.442695
  %v840 = vpow.pop %v839
  %v841 = vmul.f32 %v754, 1.442695
  %v842 = vpow.pop %v841
  %v843 = vmul.f32 %v755, 1.442695
  %v844 = vpow.pop %v843
  %v845 = vmul.f32 %v756, 1.442695
  %v846 = vpow.pop %v845
  %v847 = vmul.f32 %v757, 1.442695
  %v848 = vpow.pop %v847
  %v849 = vmul.f32 %v758, 1.442695
  %v850 = vpow.pop %v849
  %v851 = vmul.f32 %v759, 1.442695
  %v852 = vpow.pop %v851
  %v853 = vmul.f32 %v760, 1.442695
  %v854 = vpow.pop %v853
  %v855 = vmul.f32 %v761, 1.442695
  %v856 = vpow.pop %v855
  %v857 = vmul.f32 %v762, 1.442695
  %v858 = vpow.pop %v857
  %v859 = vmul.f32 %v763, 1.442695
  %v860 = vpow.pop %v859
  %v861 = vmul.f32 %v764, 1.442695
  %v862 = vpow.pop %v861
  %v863 = vmul.f32 %v765, 1.442695
  %v864 = vpow.pop %v863
  %v865 = vmul.f32 %v766, 1.442695
  %v866 = vpow.pop %v865
  %v867 = vmul.f32 %v767, 1.442695
  %v868 = vpow.pop %v867
  %v869 = vmul.f32 %v768, 1.442695
  %v870 = vpow.pop %v869
  %v871 = vmul.f32 %v769, 1.442695
  %v872 = vpow.pop %v871
  %v873 = vmul.f32 %v770, 1.442695
  %v874 = vpow.pop %v873
  %v875 = vmul.f32 %v771, 1.442695
  %v876 = vpow.pop %v875
  %v877 = vmul.f32 %v772, 1.442695
  %v878 = vpow.pop %v877
  %v879 = vmul.f32 %v773, 1.442695
  %v880 = vpow.pop %v879
  %v881 = vmul.f32 %v774, 1.442695
  %v882 = vpow.pop %v881
  %v883 = vmul.f32 %v775, 1.442695
  %v884 = vpow.pop %v883
  %v885 = vmul.f32 %v776, 1.442695
  %v886 = vpow.pop %v885
  %v887 = vmul.f32 %v777, 1.442695
  %v888 = vpow.pop %v887
  %v889 = vmul.f32 %v778, 1.442695
  %v890 = vpow.pop %v889
  %v891 = vmul.f32 %v779, 1.442695
  %v892 = vpow.pop %v891
  %v893 = vmul.f32 %v780, 1.442695
  %v894 = vpow.pop %v893
  %v895 = vmul.f32 %v781, 1.442695
  %v896 = vpow.pop %v895
  %v897 = vmul.f32 %v782, 1.442695
  %v898 = vpow.pop %v897
  %v899 = vmul.f32 %v783, 1.442695
  %v900 = vpow.pop %v899
  %v901 = vmul.f32 %v784, 1.442695
  %v902 = vpow.pop %v901
  %v903 = vmul.f32 %v785, 1.442695
  %v904 = vpow.pop %v903
  %v905 = vmul.f32 %v786, 1.442695
  %v906 = vpow.pop %v905
  %v907 = vmul.f32 %v787, 1.442695
  %v908 = vpow.pop %v907
  %v909 = vmul.f32 %v788, 1.442695
  %v910 = vpow.pop %v909
  %v911 = vmul.f32 %v789, 1.442695
  %v912 = vpow.pop %v911
  %v913 = vmul.f32 %v790, 1.442695
  %v914 = vpow.pop %v913
  %v915 = vmul.f32 %v791, 1.442695
  %v916 = vpow.pop %v915
  %v917 = vmul.f32 %v792, 1.442695
  %v918 = vpow.pop %v917
  %v919 = vadd.f32 %v794, 1.0
  %v920 = vadd.f32 %v796, 1.0
  %v921 = vadd.f32 %v798, 1.0
  %v922 = vadd.f32 %v800, 1.0
  %v923 = vadd.f32 %v802, 1.0
  %v924 = vadd.f32 %v804, 1.0
  %v925 = vadd.f32 %v806, 1.0
  %v926 = vadd.f32 %v808, 1.0
  %v927 = vadd.f32 %v810, 1.0
  %v928 = vadd.f32 %v812, 1.0
  %v929 = vadd.f32 %v814, 1.0
  %v930 = vadd.f32 %v816, 1.0
  %v931 = vadd.f32 %v818, 1.0
  %v932 = vadd.f32 %v820, 1.0
  %v933 = vadd.f32 %v822, 1.0
  %v934 = vadd.f32 %v824, 1.0
  %v935 = vadd.f32 %v826, 1.0
  %v936 = vadd.f32 %v828, 1.0
  %v937 = vadd.f32 %v830, 1.0
  %v938 = vadd.f32 %v832, 1.0
  %v939 = vadd.f32 %v834, 1.0
  %v940 = vadd.f32 %v836, 1.0
  %v941 = vadd.f32 %v838, 1.0
  %v942 = vadd.f32 %v840, 1.0
  %v943 = vadd.f32 %v842, 1.0
  %v944 = vadd.f32 %v844, 1.0
  %v945 = vadd.f32 %v846, 1.0
  %v946 = vadd.f32 %v848, 1.0
  %v947 = vadd.f32 %v850, 1.0
  %v948 = vadd.f32 %v852, 1.0
  %v949 = vadd.f32 %v854, 1.0
  %v950 = vadd.f32 %v856, 1.0
  %v951 = vadd.f32 %v858, 1.0
  %v952 = vadd.f32 %v860, 1.0
  %v953 = vadd.f32 %v862, 1.0
  %v954 = vadd.f32 %v864, 1.0
  %v955 = vadd.f32 %v866, 1.0
  %v956 = vadd.f32 %v868, 1.0
  %v957 = vadd.f32 %v870, 1.0
  %v958 = vadd.f32 %v872, 1.0
  %v959 = vadd.f32 %v874, 1.0
  %v960 = vadd.f32 %v876, 1.0
  %v961 = vadd.f32 %v878, 1.0
  %v962 = vadd.f32 %v880, 1.0
  %v963 = vadd.f32 %v882, 1.0
  %v964 = vadd.f32 %v884, 1.0
  %v965 = vadd.f32 %v886, 1.0
  %v966 = vadd.f32 %v888, 1.0
  %v967 = vadd.f32 %v890, 1.0
  %v968 = vadd.f32 %v892, 1.0
  %v969 = vadd.f32 %v894, 1.0
  %v970 = vadd.f32 %v896, 1.0
  %v971 = vadd.f32 %v898, 1.0
  %v972 = vadd.f32 %v900, 1.0
  %v973 = vadd.f32 %v902, 1.0
  %v974 = vadd.f32 %v904, 1.0
  %v975 = vadd.f32 %v906, 1.0
  %v976 = vadd.f32 %v908, 1.0
  %v977 = vadd.f32 %v910, 1.0
  %v978 = vadd.f32 %v912, 1.0
  %v979 = vadd.f32 %v914, 1.0
  %v980 = vadd.f32 %v916, 1.0
  %v981 = vadd.f32 %v918, 1.0
  %v982 = vrcp.pop %v919
  %v983 = vmul.f32 1.0, %v982
  %v984 = vrcp.pop %v920
  %v985 = vmul.f32 1.0, %v984
  %v986 = vrcp.pop %v921
  %v987 = vmul.f32 1.0, %v986
  %v988 = vrcp.pop %v922
  %v989 = vmul.f32 1.0, %v988
  %v990 = vrcp.pop %v923
  %v991 = vmul.f32 1.0, %v990
  %v992 = vrcp.pop %v924
  %v993 = vmul.f32 1.0, %v992
  %v994 = vrcp.pop %v925
  %v995 = vmul.f32 1.0, %v994
  %v996 = vrcp.pop %v926
  %v997 = vmul.f32 1.0, %v996
  %v998 = vrcp.pop %v927
  %v999 = vmul.f32 1.0, %v998
  %v1000 = vrcp.pop %v928
  %v1001 = vmul.f32 1.0, %v1000
  %v1002 = vrcp.pop %v929
  %v1003 = vmul.f32 1.0, %v1002
  %v1004 = vrcp.pop %v930
  %v1005 = vmul.f32 1.0, %v1004
  %v1006 = vrcp.pop %v931
  %v1007 = vmul.f32 1.0, %v1006
  %v1008 = vrcp.pop %v932
  %v1009 = vmul.f32 1.0, %v1008
  %v1010 = vrcp.pop %v933
  %v1011 = vmul.f32 1.0, %v1010
  %v1012 = vrcp.pop %v934
  %v1013 = vmul.f32 1.0, %v1012
  %v1014 = vrcp.pop %v935
  %v1015 = vmul.f32 1.0, %v1014
  %v1016 = vrcp.pop %v936
  %v1017 = vmul.f32 1.0, %v1016
  %v1018 = vrcp.pop %v937
  %v1019 = vmul.f32 1.0, %v1018
  %v1020 = vrcp.pop %v938
  %v1021 = vmul.f32 1.0, %v1020
  %v1022 = vrcp.pop %v939
  %v1023 = vmul.f32 1.0, %v1022
  %v1024 = vrcp.pop %v940
  %v1025 = vmul.f32 1.0, %v1024
  %v1026 = vrcp.pop %v941
  %v1027 = vmul.f32 1.0, %v1026
  %v1028 = vrcp.pop %v942
  %v1029 = vmul.f32 1.0, %v1028
  %v1030 = vrcp.pop %v943
  %v1031 = vmul.f32 1.0, %v1030
  %v1032 = vrcp.pop %v944
  %v1033 = vmul.f32 1.0, %v1032
  %v1034 = vrcp.pop %v945
  %v1035 = vmul.f32 1.0, %v1034
  %v1036 = vrcp.pop %v946
  %v1037 = vmul.f32 1.0, %v1036
  %v1038 = vrcp.pop %v947
  %v1039 = vmul.f32 1.0, %v1038
  %v1040 = vrcp.pop %v948
  %v1041 = vmul.f32 1.0, %v1040
  %v1042 = vrcp.pop %v949
  %v1043 = vmul.f32 1.0, %v1042
  %v1044 = vrcp.pop %v950
  %v1045 = vmul.f32 1.0, %v1044
  %v1046 = vrcp.pop %v951
  %v1047 = vmul.f32 1.0, %v1046
  %v1048 = vrcp.pop %v952
  %v1049 = vmul.f32 1.0, %v1048
  %v1050 = vrcp.pop %v953
  %v1051 = vmul.f32 1.0, %v1050
  %v1052 = vrcp.pop %v954
  %v1053 = vmul.f32 1.0, %v1052
  %v1054 = vrcp.pop %v955
  %v1055 = vmul.f32 1.0, %v1054
  %v1056 = vrcp.pop %v956
  %v1057 = vmul.f32 1.0, %v1056
  %v1058 = vrcp.pop %v957
  %v1059 = vmul.f32 1.0, %v1058
  %v1060 = vrcp.pop %v958
  %v1061 = vmul.f32 1.0, %v1060
  %v1062 = vrcp.pop %v959
  %v1063 = vmul.f32 1.0, %v1062
  %v1064 = vrcp.pop %v960
  %v1065 = vmul.f32 1.0, %v1064
  %v1066 = vrcp.pop %v961
  %v1067 = vmul.f32 1.0, %v1066
  %v1068 = vrcp.pop %v962
  %v1069 = vmul.f32 1.0, %v1068
  %v1070 = vrcp.pop %v963
  %v1071 = vmul.f32 1.0, %v1070
  %v1072 = vrcp.pop %v964
  %v1073 = vmul.f32 1.0, %v1072
  %v1074 = vrcp.pop %v965
  %v1075 = vmul.f32 1.0, %v1074
  %v1076 = vrcp.pop %v966
  %v1077 = vmul.f32 1.0, %v1076
  %v1078 = vrcp.pop %v967
  %v1079 = vmul.f32 1.0, %v1078
  %v1080 = vrcp.pop %v968
  %v1081 = vmul.f32 1.0, %v1080
  %v1082 = vrcp.pop %v969
  %v1083 = vmul.f32 1.0, %v1082
  %v1084 = vrcp.pop %v970
  %v1085 = vmul.f32 1.0, %v1084
  %v1086 = vrcp.pop %v971
  %v1087 = vmul.f32 1.0, %v1086
  %v1088 = vrcp.pop %v972
  %v1089 = vmul.f32 1.0, %v1088
  %v1090 = vrcp.pop %v973
  %v1091 = vmul.f32 1.0, %v1090
  %v1092 = vrcp.pop %v974
  %v1093 = vmul.f32 1.0, %v1092
  %v1094 = vrcp.pop %v975
  %v1095 = vmul.f32 1.0, %v1094
  %v1096 = vrcp.pop %v976
  %v1097 = vmul.f32 1.0, %v1096
  %v1098 = vrcp.pop %v977
  %v1099 = vmul.f32 1.0, %v1098
  %v1100 = vrcp.pop %v978
  %v1101 = vmul.f32 1.0, %v1100
  %v1102 = vrcp.pop %v979
  %v1103 = vmul.f32 1.0, %v1102
  %v1104 = vrcp.pop %v980
  %v1105 = vmul.f32 1.0, %v1104
  %v1106 = vrcp.pop %v981
  %v1107 = vmul.f32 1.0, %v1106
  %v1108 = vmul.f32 %v667, %v983
  %v1109 = vmul.f32 %v668, %v985
  %v1110 = vmul.f32 %v669, %v987
  %v1111 = vmul.f32 %v670, %v989
  %v1112 = vmul.f32 %v671, %v991
  %v1113 = vmul.f32 %v672, %v993
  %v1114 = vmul.f32 %v673, %v995
  %v1115 = vmul.f32 %v674, %v997
  %v1116 = vmul.f32 %v675, %v999
  %v1117 = vmul.f32 %v676, %v1001
  %v1118 = vmul.f32 %v677, %v1003
  %v1119 = vmul.f32 %v678, %v1005
  %v1120 = vmul.f32 %v679, %v1007
  %v1121 = vmul.f32 %v680, %v1009
  %v1122 = vmul.f32 %v681, %v1011
  %v1123 = vmul.f32 %v682, %v1013
  %v1124 = vmul.f32 %v683, %v1015
  %v1125 = vmul.f32 %v684, %v1017
  %v1126 = vmul.f32 %v685, %v1019
  %v1127 = vmul.f32 %v686, %v1021
  %v1128 = vmul.f32 %v687, %v1023
  %v1129 = vmul.f32 %v688, %v1025
  %v1130 = vmul.f32 %v689, %v1027
  %v1131 = vmul.f32 %v690, %v1029
  %v1132 = vmul.f32 %v691, %v1031
  %v1133 = vmul.f32 %v692, %v1033
  %v1134 = vmul.f32 %v693, %v1035
  %v1135 = vmul.f32 %v694, %v1037
  %v1136 = vmul.f32 %v695, %v1039
  %v1137 = vmul.f32 %v696, %v1041
  %v1138 = vmul.f32 %v697, %v1043
  %v1139 = vmul.f32 %v698, %v1045
  %v1140 = vmul.f32 %v699, %v1047
  %v1141 = vmul.f32 %v700, %v1049
  %v1142 = vmul.f32 %v701, %v1051
  %v1143 = vmul.f32 %v702, %v1053
  %v1144 = vmul.f32 %v703, %v1055
  %v1145 = vmul.f32 %v704, %v1057
  %v1146 = vmul.f32 %v705, %v1059
  %v1147 = vmul.f32 %v706, %v1061
  %v1148 = vmul.f32 %v707, %v1063
  %v1149 = vmul.f32 %v708, %v1065
  %v1150 = vmul.f32 %v709, %v1067
  %v1151 = vmul.f32 %v710, %v1069
  %v1152 = vmul.f32 %v711, %v1071
  %v1153 = vmul.f32 %v712, %v1073
  %v1154 = vmul.f32 %v713, %v1075
  %v1155 = vmul.f32 %v714, %v1077
  %v1156 = vmul.f32 %v715, %v1079
  %v1157 = vmul.f32 %v716, %v1081
  %v1158 = vmul.f32 %v717, %v1083
  %v1159 = vmul.f32 %v718, %v1085
  %v1160 = vmul.f32 %v719, %v1087
  %v1161 = vmul.f32 %v720, %v1089
  %v1162 = vmul.f32 %v721, %v1091
  %v1163 = vmul.f32 %v722, %v1093
  %v1164 = vmul.f32 %v723, %v1095
  %v1165 = vmul.f32 %v724, %v1097
  %v1166 = vmul.f32 %v725, %v1099
  %v1167 = vmul.f32 %v726, %v1101
  %v1168 = vmul.f32 %v727, %v1103
  %v1169 = vmul.f32 %v728, %v1105
  %v1170 = vmul.f32 %v729, %v1107
  %v1171 = vld [vmem:[%s3] sm:$0xff]
  %v1172 = vld [vmem:[%s3 + $0x8] sm:$0xff]
  %v1173 = vld [vmem:[%s3 + $0x10] sm:$0xff]
  %v1174 = vld [vmem:[%s3 + $0x18] sm:$0xff]
  %v1175 = vld [vmem:[%s3 + $0x20] sm:$0xff]
  %v1176 = vld [vmem:[%s3 + $0x28] sm:$0xff]
  %v1177 = vld [vmem:[%s3 + $0x30] sm:$0xff]
  %v1178 = vld [vmem:[%s3 + $0x38] sm:$0xff]
  %v1179 = vld [vmem:[%s3 + $0x40] sm:$0xff]
  %v1180 = vld [vmem:[%s3 + $0x48] sm:$0xff]
  %v1181 = vld [vmem:[%s3 + $0x50] sm:$0xff]
  %v1182 = vld [vmem:[%s3 + $0x58] sm:$0xff]
  %v1183 = vld [vmem:[%s3 + $0x60] sm:$0xff]
  %v1184 = vld [vmem:[%s3 + $0x68] sm:$0xff]
  %v1185 = vld [vmem:[%s3 + $0x70] sm:$0xff]
  %v1186 = vld [vmem:[%s3 + $0x78] sm:$0xff]
  %v1187 = vld [vmem:[#allocation2] sm:$0x1]
  %v1189 = vlaneseq
  %v1190 = vshrl.u32 %v1189, 7
  %v1191 = vsub.s32 0, %v1190
  %v1192 = vrot.slane %v1187, %v1191
  %1194 = vmatprep.subr.mxu0 0.0
  %1195 = vmatpush1.msra.mxu0 %v1171
  %1196 = vmatprep.subr.mxu0 0.0
  %1197 = vmatpush1.msra.mxu0 %v1172
  %1198 = vmatprep.subr.mxu0 0.0
  %1199 = vmatpush1.msra.mxu0 %v1173
  %1200 = vmatprep.subr.mxu0 0.0
  %1201 = vmatpush1.msra.mxu0 %v1174
  %1202 = vmatprep.subr.mxu0 0.0
  %1203 = vmatpush1.msra.mxu0 %v1175
  %1204 = vmatprep.subr.mxu0 0.0
  %1205 = vmatpush1.msra.mxu0 %v1176
  %1206 = vmatprep.subr.mxu0 0.0
  %1207 = vmatpush1.msra.mxu0 %v1177
  %1208 = vmatprep.subr.mxu0 0.0
  %1209 = vmatpush1.msra.mxu0 %v1178
  %1210 = vmatprep.subr.mxu0 0.0
  %1211 = vmatpush1.msra.mxu0 %v1179
  %1212 = vmatprep.subr.mxu0 0.0
  %1213 = vmatpush1.msra.mxu0 %v1180
  %1214 = vmatprep.subr.mxu0 0.0
  %1215 = vmatpush1.msra.mxu0 %v1181
  %1216 = vmatprep.subr.mxu0 0.0
  %1217 = vmatpush1.msra.mxu0 %v1182
  %1218 = vmatprep.subr.mxu0 0.0
  %1219 = vmatpush1.msra.mxu0 %v1183
  %1220 = vmatprep.subr.mxu0 0.0
  %1221 = vmatpush1.msra.mxu0 %v1184
  %1222 = vmatprep.subr.mxu0 0.0
  %1223 = vmatpush1.msra.mxu0 %v1185
  %1224 = vmatprep.subr.mxu0 0.0
  %1225 = vmatpush1.msra.mxu0 %v1186
  %1226 = vmatprep.subr.mxu0 0.0
  %1227 = vmatpush1.msra.mxu0 0.0
  %1228 = vmatprep.subr.mxu0 0.0
  %1229 = vmatpush1.msra.mxu0 0.0
  %1230 = vmatprep.subr.mxu0 0.0
  %1231 = vmatpush1.msra.mxu0 0.0
  %1232 = vmatprep.subr.mxu0 0.0
  %1233 = vmatpush1.msra.mxu0 0.0
  %1234 = vmatprep.subr.mxu0 0.0
  %1235 = vmatpush1.msra.mxu0 0.0
  %1236 = vmatprep.subr.mxu0 0.0
  %1237 = vmatpush1.msra.mxu0 0.0
  %1238 = vmatprep.subr.mxu0 0.0
  %1239 = vmatpush1.msra.mxu0 0.0
  %1240 = vmatprep.subr.mxu0 0.0
  %1241 = vmatpush1.msra.mxu0 0.0
  %1242 = vmatprep.subr.mxu0 0.0
  %1243 = vmatpush1.msra.mxu0 0.0
  %1244 = vmatprep.subr.mxu0 0.0
  %1245 = vmatpush1.msra.mxu0 0.0
  %1246 = vmatprep.subr.mxu0 0.0
  %1247 = vmatpush1.msra.mxu0 0.0
  %1248 = vmatprep.subr.mxu0 0.0
  %1249 = vmatpush1.msra.mxu0 0.0
  %1250 = vmatprep.subr.mxu0 0.0
  %1251 = vmatpush1.msra.mxu0 0.0
  %1252 = vmatprep.subr.mxu0 0.0
  %1253 = vmatpush1.msra.mxu0 0.0
  %1254 = vmatprep.subr.mxu0 0.0
  %1255 = vmatpush1.msra.mxu0 0.0
  %1256 = vmatprep.subr.mxu0 0.0
  %1257 = vmatpush1.msra.mxu0 0.0
  %1258 = vmatprep.mubr.f32.mxu0 0.0
  %1259 = vmatmul.mubr.f32.gmra.mrb[0].mxu0 %v1108
  %v1260 = vpop.f32.mrb[0].mxu0
  %v1261 = vadd.f32 %v1192, %v1260
  %v1262 = vpop.f32.mrb[0].mxu0
  %1263 = vmatprep.mubr.f32.mxu0 0.0
  %1264 = vmatmul.mubr.f32.gmra.mrb[0].mxu0 %v1109
  %v1265 = vpop.f32.mrb[0].mxu0
  %v1266 = vadd.f32 %v1192, %v1265
  %v1267 = vpop.f32.mrb[0].mxu0
  %1268 = vmatprep.mubr.f32.mxu0 0.0
  %1269 = vmatmul.mubr.f32.gmra.mrb[0].mxu0 %v1110
  %v1270 = vpop.f32.mrb[0].mxu0
  %v1271 = vadd.f32 %v1192, %v1270
  %v1272 = vpop.f32.mrb[0].mxu0
  %1273 = vmatprep.mubr.f32.mxu0 0.0
  %1274 = vmatmul.mubr.f32.gmra.mrb[0].mxu0 %v1111
  %v1275 = vpop.f32.mrb[0].mxu0
  %v1276 = vadd.f32 %v1192, %v1275
  %v1277 = vpop.f32.mrb[0].mxu0
  %1278 = vmatprep.mubr.f32.mxu0 0.0
  %1279 = vmatmul.mubr.f32.gmra.mrb[0].mxu0 %v1112
  %v1280 = vpop.f32.mrb[0].mxu0
  %v1281 = vadd.f32 %v1192, %v1280
  %v1282 = vpop.f32.mrb[0].mxu0
  %1283 = vmatprep.mubr.f32.mxu0 0.0
  %1284 = vmatmul.mubr.f32.gmra.mrb[0].mxu0 %v1113
  %v1285 = vpop.f32.mrb[0].mxu0
  %v1286 = vadd.f32 %v1192, %v1285
  %v1287 = vpop.f32.mrb[0].mxu0
  %1288 = vmatprep.mubr.f32.mxu0 0.0
  %1289 = vmatmul.mubr.f32.gmra.mrb[0].mxu0 %v1114
  %v1290 = vpop.f32.mrb[0].mxu0
  %v1291 = vadd.f32 %v1192, %v1290
  %v1292 = vpop.f32.mrb[0].mxu0
  %1293 = vmatprep.mubr.f32.mxu0 0.0
  %1294 = vmatmul.mubr.f32.gmra.mrb[0].mxu0 %v1115
  %v1295 = vpop.f32.mrb[0].mxu0
  %v1296 = vadd.f32 %v1192, %v1295
  %v1297 = vpop.f32.mrb[0].mxu0
  %1298 = vmatprep.mubr.f32.mxu0 0.0
  %1299 = vmatmul.mubr.f32.gmra.mrb[0].mxu0 %v1116
  %v1300 = vpop.f32.mrb[0].mxu0
  %v1301 = vadd.f32 %v1192, %v1300
  %v1302 = vpop.f32.mrb[0].mxu0
  %1303 = vmatprep.mubr.f32.mxu0 0.0
  %1304 = vmatmul.mubr.f32.gmra.mrb[0].mxu0 %v1117
  %v1305 = vpop.f32.mrb[0].mxu0
  %v1306 = vadd.f32 %v1192, %v1305
  %v1307 = vpop.f32.mrb[0].mxu0
  %1308 = vmatprep.mubr.f32.mxu0 0.0
  %1309 = vmatmul.mubr.f32.gmra.mrb[0].mxu0 %v1118
  %v1310 = vpop.f32.mrb[0].mxu0
  %v1311 = vadd.f32 %v1192, %v1310
  %v1312 = vpop.f32.mrb[0].mxu0
  %1313 = vmatprep.mubr.f32.mxu0 0.0
  %1314 = vmatmul.mubr.f32.gmra.mrb[0].mxu0 %v1119
  %v1315 = vpop.f32.mrb[0].mxu0
  %v1316 = vadd.f32 %v1192, %v1315
  %v1317 = vpop.f32.mrb[0].mxu0
  %1318 = vmatprep.mubr.f32.mxu0 0.0
  %1319 = vmatmul.mubr.f32.gmra.mrb[0].mxu0 %v1120
  %v1320 = vpop.f32.mrb[0].mxu0
  %v1321 = vadd.f32 %v1192, %v1320
  %v1322 = vpop.f32.mrb[0].mxu0
  %1323 = vmatprep.mubr.f32.mxu0 0.0
  %1324 = vmatmul.mubr.f32.gmra.mrb[0].mxu0 %v1121
  %v1325 = vpop.f32.mrb[0].mxu0
  %v1326 = vadd.f32 %v1192, %v1325
  %v1327 = vpop.f32.mrb[0].mxu0
  %1328 = vmatprep.mubr.f32.mxu0 0.0
  %1329 = vmatmul.mubr.f32.gmra.mrb[0].mxu0 %v1122
  %v1330 = vpop.f32.mrb[0].mxu0
  %v1331 = vadd.f32 %v1192, %v1330
  %v1332 = vpop.f32.mrb[0].mxu0
  %1333 = vmatprep.mubr.f32.mxu0 0.0
  %1334 = vmatmul.mubr.f32.gmra.mrb[0].mxu0 %v1123
  %v1335 = vpop.f32.mrb[0].mxu0
  %v1336 = vadd.f32 %v1192, %v1335
  %v1337 = vpop.f32.mrb[0].mxu0
  %1338 = vmatprep.mubr.f32.mxu0 0.0
  %1339 = vmatmul.mubr.f32.gmra.mrb[0].mxu0 %v1124
  %v1340 = vpop.f32.mrb[0].mxu0
  %v1341 = vadd.f32 %v1192, %v1340
  %v1342 = vpop.f32.mrb[0].mxu0
  %1343 = vmatprep.mubr.f32.mxu0 0.0
  %1344 = vmatmul.mubr.f32.gmra.mrb[0].mxu0 %v1125
  %v1345 = vpop.f32.mrb[0].mxu0
  %v1346 = vadd.f32 %v1192, %v1345
  %v1347 = vpop.f32.mrb[0].mxu0
  %1348 = vmatprep.mubr.f32.mxu0 0.0
  %1349 = vmatmul.mubr.f32.gmra.mrb[0].mxu0 %v1126
  %v1350 = vpop.f32.mrb[0].mxu0
  %v1351 = vadd.f32 %v1192, %v1350
  %v1352 = vpop.f32.mrb[0].mxu0
  %1353 = vmatprep.mubr.f32.mxu0 0.0
  %1354 = vmatmul.mubr.f32.gmra.mrb[0].mxu0 %v1127
  %v1355 = vpop.f32.mrb[0].mxu0
  %v1356 = vadd.f32 %v1192, %v1355
  %v1357 = vpop.f32.mrb[0].mxu0
  %1358 = vmatprep.mubr.f32.mxu0 0.0
  %1359 = vmatmul.mubr.f32.gmra.mrb[0].mxu0 %v1128
  %v1360 = vpop.f32.mrb[0].mxu0
  %v1361 = vadd.f32 %v1192, %v1360
  %v1362 = vpop.f32.mrb[0].mxu0
  %1363 = vmatprep.mubr.f32.mxu0 0.0
  %1364 = vmatmul.mubr.f32.gmra.mrb[0].mxu0 %v1129
  %v1365 = vpop.f32.mrb[0].mxu0
  %v1366 = vadd.f32 %v1192, %v1365
  %v1367 = vpop.f32.mrb[0].mxu0
  %1368 = vmatprep.mubr.f32.mxu0 0.0
  %1369 = vmatmul.mubr.f32.gmra.mrb[0].mxu0 %v1130
  %v1370 = vpop.f32.mrb[0].mxu0
  %v1371 = vadd.f32 %v1192, %v1370
  %v1372 = vpop.f32.mrb[0].mxu0
  %1373 = vmatprep.mubr.f32.mxu0 0.0
  %1374 = vmatmul.mubr.f32.gmra.mrb[0].mxu0 %v1131
  %v1375 = vpop.f32.mrb[0].mxu0
  %v1376 = vadd.f32 %v1192, %v1375
  %v1377 = vpop.f32.mrb[0].mxu0
  %1378 = vmatprep.mubr.f32.mxu0 0.0
  %1379 = vmatmul.mubr.f32.gmra.mrb[0].mxu0 %v1132
  %v1380 = vpop.f32.mrb[0].mxu0
  %v1381 = vadd.f32 %v1192, %v1380
  %v1382 = vpop.f32.mrb[0].mxu0
  %1383 = vmatprep.mubr.f32.mxu0 0.0
  %1384 = vmatmul.mubr.f32.gmra.mrb[0].mxu0 %v1133
  %v1385 = vpop.f32.mrb[0].mxu0
  %v1386 = vadd.f32 %v1192, %v1385
  %v1387 = vpop.f32.mrb[0].mxu0
  %1388 = vmatprep.mubr.f32.mxu0 0.0
  %1389 = vmatmul.mubr.f32.gmra.mrb[0].mxu0 %v1134
  %v1390 = vpop.f32.mrb[0].mxu0
  %v1391 = vadd.f32 %v1192, %v1390
  %v1392 = vpop.f32.mrb[0].mxu0
  %1393 = vmatprep.mubr.f32.mxu0 0.0
  %1394 = vmatmul.mubr.f32.gmra.mrb[0].mxu0 %v1135
  %v1395 = vpop.f32.mrb[0].mxu0
  %v1396 = vadd.f32 %v1192, %v1395
  %v1397 = vpop.f32.mrb[0].mxu0
  %1398 = vmatprep.mubr.f32.mxu0 0.0
  %1399 = vmatmul.mubr.f32.gmra.mrb[0].mxu0 %v1136
  %v1400 = vpop.f32.mrb[0].mxu0
  %v1401 = vadd.f32 %v1192, %v1400
  %v1402 = vpop.f32.mrb[0].mxu0
  %1403 = vmatprep.mubr.f32.mxu0 0.0
  %1404 = vmatmul.mubr.f32.gmra.mrb[0].mxu0 %v1137
  %v1405 = vpop.f32.mrb[0].mxu0
  %v1406 = vadd.f32 %v1192, %v1405
  %v1407 = vpop.f32.mrb[0].mxu0
  %1408 = vmatprep.mubr.f32.mxu0 0.0
  %1409 = vmatmul.mubr.f32.gmra.mrb[0].mxu0 %v1138
  %v1410 = vpop.f32.mrb[0].mxu0
  %v1411 = vadd.f32 %v1192, %v1410
  %v1412 = vpop.f32.mrb[0].mxu0
  %1413 = vmatprep.mubr.f32.mxu0 0.0
  %1414 = vmatmul.mubr.f32.gmra.mrb[0].mxu0 %v1139
  %v1415 = vpop.f32.mrb[0].mxu0
  %v1416 = vadd.f32 %v1192, %v1415
  %v1417 = vpop.f32.mrb[0].mxu0
  %1418 = vmatprep.mubr.f32.mxu0 0.0
  %1419 = vmatmul.mubr.f32.gmra.mrb[0].mxu0 %v1140
  %v1420 = vpop.f32.mrb[0].mxu0
  %v1421 = vadd.f32 %v1192, %v1420
  %v1422 = vpop.f32.mrb[0].mxu0
  %1423 = vmatprep.mubr.f32.mxu0 0.0
  %1424 = vmatmul.mubr.f32.gmra.mrb[0].mxu0 %v1141
  %v1425 = vpop.f32.mrb[0].mxu0
  %v1426 = vadd.f32 %v1192, %v1425
  %v1427 = vpop.f32.mrb[0].mxu0
  %1428 = vmatprep.mubr.f32.mxu0 0.0
  %1429 = vmatmul.mubr.f32.gmra.mrb[0].mxu0 %v1142
  %v1430 = vpop.f32.mrb[0].mxu0
  %v1431 = vadd.f32 %v1192, %v1430
  %v1432 = vpop.f32.mrb[0].mxu0
  %1433 = vmatprep.mubr.f32.mxu0 0.0
  %1434 = vmatmul.mubr.f32.gmra.mrb[0].mxu0 %v1143
  %v1435 = vpop.f32.mrb[0].mxu0
  %v1436 = vadd.f32 %v1192, %v1435
  %v1437 = vpop.f32.mrb[0].mxu0
  %1438 = vmatprep.mubr.f32.mxu0 0.0
  %1439 = vmatmul.mubr.f32.gmra.mrb[0].mxu0 %v1144
  %v1440 = vpop.f32.mrb[0].mxu0
  %v1441 = vadd.f32 %v1192, %v1440
  %v1442 = vpop.f32.mrb[0].mxu0
  %1443 = vmatprep.mubr.f32.mxu0 0.0
  %1444 = vmatmul.mubr.f32.gmra.mrb[0].mxu0 %v1145
  %v1445 = vpop.f32.mrb[0].mxu0
  %v1446 = vadd.f32 %v1192, %v1445
  %v1447 = vpop.f32.mrb[0].mxu0
  %1448 = vmatprep.mubr.f32.mxu0 0.0
  %1449 = vmatmul.mubr.f32.gmra.mrb[0].mxu0 %v1146
  %v1450 = vpop.f32.mrb[0].mxu0
  %v1451 = vadd.f32 %v1192, %v1450
  %v1452 = vpop.f32.mrb[0].mxu0
  %1453 = vmatprep.mubr.f32.mxu0 0.0
  %1454 = vmatmul.mubr.f32.gmra.mrb[0].mxu0 %v1147
  %v1455 = vpop.f32.mrb[0].mxu0
  %v1456 = vadd.f32 %v1192, %v1455
  %v1457 = vpop.f32.mrb[0].mxu0
  %1458 = vmatprep.mubr.f32.mxu0 0.0
  %1459 = vmatmul.mubr.f32.gmra.mrb[0].mxu0 %v1148
  %v1460 = vpop.f32.mrb[0].mxu0
  %v1461 = vadd.f32 %v1192, %v1460
  %v1462 = vpop.f32.mrb[0].mxu0
  %1463 = vmatprep.mubr.f32.mxu0 0.0
  %1464 = vmatmul.mubr.f32.gmra.mrb[0].mxu0 %v1149
  %v1465 = vpop.f32.mrb[0].mxu0
  %v1466 = vadd.f32 %v1192, %v1465
  %v1467 = vpop.f32.mrb[0].mxu0
  %1468 = vmatprep.mubr.f32.mxu0 0.0
  %1469 = vmatmul.mubr.f32.gmra.mrb[0].mxu0 %v1150
  %v1470 = vpop.f32.mrb[0].mxu0
  %v1471 = vadd.f32 %v1192, %v1470
  %v1472 = vpop.f32.mrb[0].mxu0
  %1473 = vmatprep.mubr.f32.mxu0 0.0
  %1474 = vmatmul.mubr.f32.gmra.mrb[0].mxu0 %v1151
  %v1475 = vpop.f32.mrb[0].mxu0
  %v1476 = vadd.f32 %v1192, %v1475
  %v1477 = vpop.f32.mrb[0].mxu0
  %1478 = vmatprep.mubr.f32.mxu0 0.0
  %1479 = vmatmul.mubr.f32.gmra.mrb[0].mxu0 %v1152
  %v1480 = vpop.f32.mrb[0].mxu0
  %v1481 = vadd.f32 %v1192, %v1480
  %v1482 = vpop.f32.mrb[0].mxu0
  %1483 = vmatprep.mubr.f32.mxu0 0.0
  %1484 = vmatmul.mubr.f32.gmra.mrb[0].mxu0 %v1153
  %v1485 = vpop.f32.mrb[0].mxu0
  %v1486 = vadd.f32 %v1192, %v1485
  %v1487 = vpop.f32.mrb[0].mxu0
  %1488 = vmatprep.mubr.f32.mxu0 0.0
  %1489 = vmatmul.mubr.f32.gmra.mrb[0].mxu0 %v1154
  %v1490 = vpop.f32.mrb[0].mxu0
  %v1491 = vadd.f32 %v1192, %v1490
  %v1492 = vpop.f32.mrb[0].mxu0
  %1493 = vmatprep.mubr.f32.mxu0 0.0
  %1494 = vmatmul.mubr.f32.gmra.mrb[0].mxu0 %v1155
  %v1495 = vpop.f32.mrb[0].mxu0
  %v1496 = vadd.f32 %v1192, %v1495
  %v1497 = vpop.f32.mrb[0].mxu0
  %1498 = vmatprep.mubr.f32.mxu0 0.0
  %1499 = vmatmul.mubr.f32.gmra.mrb[0].mxu0 %v1156
  %v1500 = vpop.f32.mrb[0].mxu0
  %v1501 = vadd.f32 %v1192, %v1500
  %v1502 = vpop.f32.mrb[0].mxu0
  %1503 = vmatprep.mubr.f32.mxu0 0.0
  %1504 = vmatmul.mubr.f32.gmra.mrb[0].mxu0 %v1157
  %v1505 = vpop.f32.mrb[0].mxu0
  %v1506 = vadd.f32 %v1192, %v1505
  %v1507 = vpop.f32.mrb[0].mxu0
  %1508 = vmatprep.mubr.f32.mxu0 0.0
  %1509 = vmatmul.mubr.f32.gmra.mrb[0].mxu0 %v1158
  %v1510 = vpop.f32.mrb[0].mxu0
  %v1511 = vadd.f32 %v1192, %v1510
  %v1512 = vpop.f32.mrb[0].mxu0
  %1513 = vmatprep.mubr.f32.mxu0 0.0
  %1514 = vmatmul.mubr.f32.gmra.mrb[0].mxu0 %v1159
  %v1515 = vpop.f32.mrb[0].mxu0
  %v1516 = vadd.f32 %v1192, %v1515
  %v1517 = vpop.f32.mrb[0].mxu0
  %1518 = vmatprep.mubr.f32.mxu0 0.0
  %1519 = vmatmul.mubr.f32.gmra.mrb[0].mxu0 %v1160
  %v1520 = vpop.f32.mrb[0].mxu0
  %v1521 = vadd.f32 %v1192, %v1520
  %v1522 = vpop.f32.mrb[0].mxu0
  %1523 = vmatprep.mubr.f32.mxu0 0.0
  %1524 = vmatmul.mubr.f32.gmra.mrb[0].mxu0 %v1161
  %v1525 = vpop.f32.mrb[0].mxu0
  %v1526 = vadd.f32 %v1192, %v1525
  %v1527 = vpop.f32.mrb[0].mxu0
  %1528 = vmatprep.mubr.f32.mxu0 0.0
  %1529 = vmatmul.mubr.f32.gmra.mrb[0].mxu0 %v1162
  %v1530 = vpop.f32.mrb[0].mxu0
  %v1531 = vadd.f32 %v1192, %v1530
  %v1532 = vpop.f32.mrb[0].mxu0
  %1533 = vmatprep.mubr.f32.mxu0 0.0
  %1534 = vmatmul.mubr.f32.gmra.mrb[0].mxu0 %v1163
  %v1535 = vpop.f32.mrb[0].mxu0
  %v1536 = vadd.f32 %v1192, %v1535
  %v1537 = vpop.f32.mrb[0].mxu0
  %1538 = vmatprep.mubr.f32.mxu0 0.0
  %1539 = vmatmul.mubr.f32.gmra.mrb[0].mxu0 %v1164
  %v1540 = vpop.f32.mrb[0].mxu0
  %v1541 = vadd.f32 %v1192, %v1540
  %v1542 = vpop.f32.mrb[0].mxu0
  %1543 = vmatprep.mubr.f32.mxu0 0.0
  %1544 = vmatmul.mubr.f32.gmra.mrb[0].mxu0 %v1165
  %v1545 = vpop.f32.mrb[0].mxu0
  %v1546 = vadd.f32 %v1192, %v1545
  %v1547 = vpop.f32.mrb[0].mxu0
  %1548 = vmatprep.mubr.f32.mxu0 0.0
  %1549 = vmatmul.mubr.f32.gmra.mrb[0].mxu0 %v1166
  %v1550 = vpop.f32.mrb[0].mxu0
  %v1551 = vadd.f32 %v1192, %v1550
  %v1552 = vpop.f32.mrb[0].mxu0
  %1553 = vmatprep.mubr.f32.mxu0 0.0
  %1554 = vmatmul.mubr.f32.gmra.mrb[0].mxu0 %v1167
  %v1555 = vpop.f32.mrb[0].mxu0
  %v1556 = vadd.f32 %v1192, %v1555
  %v1557 = vpop.f32.mrb[0].mxu0
  %1558 = vmatprep.mubr.f32.mxu0 0.0
  %1559 = vmatmul.mubr.f32.gmra.mrb[0].mxu0 %v1168
  %v1560 = vpop.f32.mrb[0].mxu0
  %v1561 = vadd.f32 %v1192, %v1560
  %v1562 = vpop.f32.mrb[0].mxu0
  %1563 = vmatprep.mubr.f32.mxu0 0.0
  %1564 = vmatmul.mubr.f32.gmra.mrb[0].mxu0 %v1169
  %v1565 = vpop.f32.mrb[0].mxu0
  %v1566 = vadd.f32 %v1192, %v1565
  %v1567 = vpop.f32.mrb[0].mxu0
  %1568 = vmatprep.mubr.f32.mxu0 0.0
  %1569 = vmatmul.mubr.f32.gmra.mrb[0].mxu0 %v1170
  %v1570 = vpop.f32.mrb[0].mxu0
  %v1571 = vadd.f32 %v1192, %v1570
  %v1572 = vpop.f32.mrb[0].mxu0
  %1573 = vdwg.mxu0
  %v1574 = vsub.f32 %v1261, %v1261
  %v1575 = vsub.f32 %v1266, %v1266
  %v1576 = vsub.f32 %v1271, %v1271
  %v1577 = vsub.f32 %v1276, %v1276
  %v1578 = vsub.f32 %v1281, %v1281
  %v1579 = vsub.f32 %v1286, %v1286
  %v1580 = vsub.f32 %v1291, %v1291
  %v1581 = vsub.f32 %v1296, %v1296
  %v1582 = vsub.f32 %v1301, %v1301
  %v1583 = vsub.f32 %v1306, %v1306
  %v1584 = vsub.f32 %v1311, %v1311
  %v1585 = vsub.f32 %v1316, %v1316
  %v1586 = vsub.f32 %v1321, %v1321
  %v1587 = vsub.f32 %v1326, %v1326
  %v1588 = vsub.f32 %v1331, %v1331
  %v1589 = vsub.f32 %v1336, %v1336
  %v1590 = vsub.f32 %v1341, %v1341
  %v1591 = vsub.f32 %v1346, %v1346
  %v1592 = vsub.f32 %v1351, %v1351
  %v1593 = vsub.f32 %v1356, %v1356
  %v1594 = vsub.f32 %v1361, %v1361
  %v1595 = vsub.f32 %v1366, %v1366
  %v1596 = vsub.f32 %v1371, %v1371
  %v1597 = vsub.f32 %v1376, %v1376
  %v1598 = vsub.f32 %v1381, %v1381
  %v1599 = vsub.f32 %v1386, %v1386
  %v1600 = vsub.f32 %v1391, %v1391
  %v1601 = vsub.f32 %v1396, %v1396
  %v1602 = vsub.f32 %v1401, %v1401
  %v1603 = vsub.f32 %v1406, %v1406
  %v1604 = vsub.f32 %v1411, %v1411
  %v1605 = vsub.f32 %v1416, %v1416
  %v1606 = vsub.f32 %v1421, %v1421
  %v1607 = vsub.f32 %v1426, %v1426
  %v1608 = vsub.f32 %v1431, %v1431
  %v1609 = vsub.f32 %v1436, %v1436
  %v1610 = vsub.f32 %v1441, %v1441
  %v1611 = vsub.f32 %v1446, %v1446
  %v1612 = vsub.f32 %v1451, %v1451
  %v1613 = vsub.f32 %v1456, %v1456
  %v1614 = vsub.f32 %v1461, %v1461
  %v1615 = vsub.f32 %v1466, %v1466
  %v1616 = vsub.f32 %v1471, %v1471
  %v1617 = vsub.f32 %v1476, %v1476
  %v1618 = vsub.f32 %v1481, %v1481
  %v1619 = vsub.f32 %v1486, %v1486
  %v1620 = vsub.f32 %v1491, %v1491
  %v1621 = vsub.f32 %v1496, %v1496
  %v1622 = vsub.f32 %v1501, %v1501
  %v1623 = vsub.f32 %v1506, %v1506
  %v1624 = vsub.f32 %v1511, %v1511
  %v1625 = vsub.f32 %v1516, %v1516
  %v1626 = vsub.f32 %v1521, %v1521
  %v1627 = vsub.f32 %v1526, %v1526
  %v1628 = vsub.f32 %v1531, %v1531
  %v1629 = vsub.f32 %v1536, %v1536
  %v1630 = vsub.f32 %v1541, %v1541
  %v1631 = vsub.f32 %v1546, %v1546
  %v1632 = vsub.f32 %v1551, %v1551
  %v1633 = vsub.f32 %v1556, %v1556
  %v1634 = vsub.f32 %v1561, %v1561
  %v1635 = vsub.f32 %v1566, %v1566
  %v1636 = vsub.f32 %v1571, %v1571
  %v1637 = vmul.f32 %v1574, 1.442695
  %v1638 = vpow.pop %v1637
  %v1639 = vmul.f32 %v1575, 1.442695
  %v1640 = vpow.pop %v1639
  %v1641 = vmul.f32 %v1576, 1.442695
  %v1642 = vpow.pop %v1641
  %v1643 = vmul.f32 %v1577, 1.442695
  %v1644 = vpow.pop %v1643
  %v1645 = vmul.f32 %v1578, 1.442695
  %v1646 = vpow.pop %v1645
  %v1647 = vmul.f32 %v1579, 1.442695
  %v1648 = vpow.pop %v1647
  %v1649 = vmul.f32 %v1580, 1.442695
  %v1650 = vpow.pop %v1649
  %v1651 = vmul.f32 %v1581, 1.442695
  %v1652 = vpow.pop %v1651
  %v1653 = vmul.f32 %v1582, 1.442695
  %v1654 = vpow.pop %v1653
  %v1655 = vmul.f32 %v1583, 1.442695
  %v1656 = vpow.pop %v1655
  %v1657 = vmul.f32 %v1584, 1.442695
  %v1658 = vpow.pop %v1657
  %v1659 = vmul.f32 %v1585, 1.442695
  %v1660 = vpow.pop %v1659
  %v1661 = vmul.f32 %v1586, 1.442695
  %v1662 = vpow.pop %v1661
  %v1663 = vmul.f32 %v1587, 1.442695
  %v1664 = vpow.pop %v1663
  %v1665 = vmul.f32 %v1588, 1.442695
  %v1666 = vpow.pop %v1665
  %v1667 = vmul.f32 %v1589, 1.442695
  %v1668 = vpow.pop %v1667
  %v1669 = vmul.f32 %v1590, 1.442695
  %v1670 = vpow.pop %v1669
  %v1671 = vmul.f32 %v1591, 1.442695
  %v1672 = vpow.pop %v1671
  %v1673 = vmul.f32 %v1592, 1.442695
  %v1674 = vpow.pop %v1673
  %v1675 = vmul.f32 %v1593, 1.442695
  %v1676 = vpow.pop %v1675
  %v1677 = vmul.f32 %v1594, 1.442695
  %v1678 = vpow.pop %v1677
  %v1679 = vmul.f32 %v1595, 1.442695
  %v1680 = vpow.pop %v1679
  %v1681 = vmul.f32 %v1596, 1.442695
  %v1682 = vpow.pop %v1681
  %v1683 = vmul.f32 %v1597, 1.442695
  %v1684 = vpow.pop %v1683
  %v1685 = vmul.f32 %v1598, 1.442695
  %v1686 = vpow.pop %v1685
  %v1687 = vmul.f32 %v1599, 1.442695
  %v1688 = vpow.pop %v1687
  %v1689 = vmul.f32 %v1600, 1.442695
  %v1690 = vpow.pop %v1689
  %v1691 = vmul.f32 %v1601, 1.442695
  %v1692 = vpow.pop %v1691
  %v1693 = vmul.f32 %v1602, 1.442695
  %v1694 = vpow.pop %v1693
  %v1695 = vmul.f32 %v1603, 1.442695
  %v1696 = vpow.pop %v1695
  %v1697 = vmul.f32 %v1604, 1.442695
  %v1698 = vpow.pop %v1697
  %v1699 = vmul.f32 %v1605, 1.442695
  %v1700 = vpow.pop %v1699
  %v1701 = vmul.f32 %v1606, 1.442695
  %v1702 = vpow.pop %v1701
  %v1703 = vmul.f32 %v1607, 1.442695
  %v1704 = vpow.pop %v1703
  %v1705 = vmul.f32 %v1608, 1.442695
  %v1706 = vpow.pop %v1705
  %v1707 = vmul.f32 %v1609, 1.442695
  %v1708 = vpow.pop %v1707
  %v1709 = vmul.f32 %v1610, 1.442695
  %v1710 = vpow.pop %v1709
  %v1711 = vmul.f32 %v1611, 1.442695
  %v1712 = vpow.pop %v1711
  %v1713 = vmul.f32 %v1612, 1.442695
  %v1714 = vpow.pop %v1713
  %v1715 = vmul.f32 %v1613, 1.442695
  %v1716 = vpow.pop %v1715
  %v1717 = vmul.f32 %v1614, 1.442695
  %v1718 = vpow.pop %v1717
  %v1719 = vmul.f32 %v1615, 1.442695
  %v1720 = vpow.pop %v1719
  %v1721 = vmul.f32 %v1616, 1.442695
  %v1722 = vpow.pop %v1721
  %v1723 = vmul.f32 %v1617, 1.442695
  %v1724 = vpow.pop %v1723
  %v1725 = vmul.f32 %v1618, 1.442695
  %v1726 = vpow.pop %v1725
  %v1727 = vmul.f32 %v1619, 1.442695
  %v1728 = vpow.pop %v1727
  %v1729 = vmul.f32 %v1620, 1.442695
  %v1730 = vpow.pop %v1729
  %v1731 = vmul.f32 %v1621, 1.442695
  %v1732 = vpow.pop %v1731
  %v1733 = vmul.f32 %v1622, 1.442695
  %v1734 = vpow.pop %v1733
  %v1735 = vmul.f32 %v1623, 1.442695
  %v1736 = vpow.pop %v1735
  %v1737 = vmul.f32 %v1624, 1.442695
  %v1738 = vpow.pop %v1737
  %v1739 = vmul.f32 %v1625, 1.442695
  %v1740 = vpow.pop %v1739
  %v1741 = vmul.f32 %v1626, 1.442695
  %v1742 = vpow.pop %v1741
  %v1743 = vmul.f32 %v1627, 1.442695
  %v1744 = vpow.pop %v1743
  %v1745 = vmul.f32 %v1628, 1.442695
  %v1746 = vpow.pop %v1745
  %v1747 = vmul.f32 %v1629, 1.442695
  %v1748 = vpow.pop %v1747
  %v1749 = vmul.f32 %v1630, 1.442695
  %v1750 = vpow.pop %v1749
  %v1751 = vmul.f32 %v1631, 1.442695
  %v1752 = vpow.pop %v1751
  %v1753 = vmul.f32 %v1632, 1.442695
  %v1754 = vpow.pop %v1753
  %v1755 = vmul.f32 %v1633, 1.442695
  %v1756 = vpow.pop %v1755
  %v1757 = vmul.f32 %v1634, 1.442695
  %v1758 = vpow.pop %v1757
  %v1759 = vmul.f32 %v1635, 1.442695
  %v1760 = vpow.pop %v1759
  %v1761 = vmul.f32 %v1636, 1.442695
  %v1762 = vpow.pop %v1761
  %v1763 = vadd.f32 %v1638, 0.0
  %v1764 = vadd.f32 %v1640, 0.0
  %v1765 = vadd.f32 %v1642, 0.0
  %v1766 = vadd.f32 %v1644, 0.0
  %v1767 = vadd.f32 %v1646, 0.0
  %v1768 = vadd.f32 %v1648, 0.0
  %v1769 = vadd.f32 %v1650, 0.0
  %v1770 = vadd.f32 %v1652, 0.0
  %v1771 = vadd.f32 %v1654, 0.0
  %v1772 = vadd.f32 %v1656, 0.0
  %v1773 = vadd.f32 %v1658, 0.0
  %v1774 = vadd.f32 %v1660, 0.0
  %v1775 = vadd.f32 %v1662, 0.0
  %v1776 = vadd.f32 %v1664, 0.0
  %v1777 = vadd.f32 %v1666, 0.0
  %v1778 = vadd.f32 %v1668, 0.0
  %v1779 = vadd.f32 %v1670, 0.0
  %v1780 = vadd.f32 %v1672, 0.0
  %v1781 = vadd.f32 %v1674, 0.0
  %v1782 = vadd.f32 %v1676, 0.0
  %v1783 = vadd.f32 %v1678, 0.0
  %v1784 = vadd.f32 %v1680, 0.0
  %v1785 = vadd.f32 %v1682, 0.0
  %v1786 = vadd.f32 %v1684, 0.0
  %v1787 = vadd.f32 %v1686, 0.0
  %v1788 = vadd.f32 %v1688, 0.0
  %v1789 = vadd.f32 %v1690, 0.0
  %v1790 = vadd.f32 %v1692, 0.0
  %v1791 = vadd.f32 %v1694, 0.0
  %v1792 = vadd.f32 %v1696, 0.0
  %v1793 = vadd.f32 %v1698, 0.0
  %v1794 = vadd.f32 %v1700, 0.0
  %v1795 = vadd.f32 %v1702, 0.0
  %v1796 = vadd.f32 %v1704, 0.0
  %v1797 = vadd.f32 %v1706, 0.0
  %v1798 = vadd.f32 %v1708, 0.0
  %v1799 = vadd.f32 %v1710, 0.0
  %v1800 = vadd.f32 %v1712, 0.0
  %v1801 = vadd.f32 %v1714, 0.0
  %v1802 = vadd.f32 %v1716, 0.0
  %v1803 = vadd.f32 %v1718, 0.0
  %v1804 = vadd.f32 %v1720, 0.0
  %v1805 = vadd.f32 %v1722, 0.0
  %v1806 = vadd.f32 %v1724, 0.0
  %v1807 = vadd.f32 %v1726, 0.0
  %v1808 = vadd.f32 %v1728, 0.0
  %v1809 = vadd.f32 %v1730, 0.0
  %v1810 = vadd.f32 %v1732, 0.0
  %v1811 = vadd.f32 %v1734, 0.0
  %v1812 = vadd.f32 %v1736, 0.0
  %v1813 = vadd.f32 %v1738, 0.0
  %v1814 = vadd.f32 %v1740, 0.0
  %v1815 = vadd.f32 %v1742, 0.0
  %v1816 = vadd.f32 %v1744, 0.0
  %v1817 = vadd.f32 %v1746, 0.0
  %v1818 = vadd.f32 %v1748, 0.0
  %v1819 = vadd.f32 %v1750, 0.0
  %v1820 = vadd.f32 %v1752, 0.0
  %v1821 = vadd.f32 %v1754, 0.0
  %v1822 = vadd.f32 %v1756, 0.0
  %v1823 = vadd.f32 %v1758, 0.0
  %v1824 = vadd.f32 %v1760, 0.0
  %v1825 = vadd.f32 %v1762, 0.0
  %v1826 = vrcp.pop %v1763
  %v1827 = vmul.f32 %v1638, %v1826
  %v1828 = vrcp.pop %v1764
  %v1829 = vmul.f32 %v1640, %v1828
  %v1830 = vrcp.pop %v1765
  %v1831 = vmul.f32 %v1642, %v1830
  %v1832 = vrcp.pop %v1766
  %v1833 = vmul.f32 %v1644, %v1832
  %v1834 = vrcp.pop %v1767
  %v1835 = vmul.f32 %v1646, %v1834
  %v1836 = vrcp.pop %v1768
  %v1837 = vmul.f32 %v1648, %v1836
  %v1838 = vrcp.pop %v1769
  %v1839 = vmul.f32 %v1650, %v1838
  %v1840 = vrcp.pop %v1770
  %v1841 = vmul.f32 %v1652, %v1840
  %v1842 = vrcp.pop %v1771
  %v1843 = vmul.f32 %v1654, %v1842
  %v1844 = vrcp.pop %v1772
  %v1845 = vmul.f32 %v1656, %v1844
  %v1846 = vrcp.pop %v1773
  %v1847 = vmul.f32 %v1658, %v1846
  %v1848 = vrcp.pop %v1774
  %v1849 = vmul.f32 %v1660, %v1848
  %v1850 = vrcp.pop %v1775
  %v1851 = vmul.f32 %v1662, %v1850
  %v1852 = vrcp.pop %v1776
  %v1853 = vmul.f32 %v1664, %v1852
  %v1854 = vrcp.pop %v1777
  %v1855 = vmul.f32 %v1666, %v1854
  %v1856 = vrcp.pop %v1778
  %v1857 = vmul.f32 %v1668, %v1856
  %v1858 = vrcp.pop %v1779
  %v1859 = vmul.f32 %v1670, %v1858
  %v1860 = vrcp.pop %v1780
  %v1861 = vmul.f32 %v1672, %v1860
  %v1862 = vrcp.pop %v1781
  %v1863 = vmul.f32 %v1674, %v1862
  %v1864 = vrcp.pop %v1782
  %v1865 = vmul.f32 %v1676, %v1864
  %v1866 = vrcp.pop %v1783
  %v1867 = vmul.f32 %v1678, %v1866
  %v1868 = vrcp.pop %v1784
  %v1869 = vmul.f32 %v1680, %v1868
  %v1870 = vrcp.pop %v1785
  %v1871 = vmul.f32 %v1682, %v1870
  %v1872 = vrcp.pop %v1786
  %v1873 = vmul.f32 %v1684, %v1872
  %v1874 = vrcp.pop %v1787
  %v1875 = vmul.f32 %v1686, %v1874
  %v1876 = vrcp.pop %v1788
  %v1877 = vmul.f32 %v1688, %v1876
  %v1878 = vrcp.pop %v1789
  %v1879 = vmul.f32 %v1690, %v1878
  %v1880 = vrcp.pop %v1790
  %v1881 = vmul.f32 %v1692, %v1880
  %v1882 = vrcp.pop %v1791
  %v1883 = vmul.f32 %v1694, %v1882
  %v1884 = vrcp.pop %v1792
  %v1885 = vmul.f32 %v1696, %v1884
  %v1886 = vrcp.pop %v1793
  %v1887 = vmul.f32 %v1698, %v1886
  %v1888 = vrcp.pop %v1794
  %v1889 = vmul.f32 %v1700, %v1888
  %v1890 = vrcp.pop %v1795
  %v1891 = vmul.f32 %v1702, %v1890
  %v1892 = vrcp.pop %v1796
  %v1893 = vmul.f32 %v1704, %v1892
  %v1894 = vrcp.pop %v1797
  %v1895 = vmul.f32 %v1706, %v1894
  %v1896 = vrcp.pop %v1798
  %v1897 = vmul.f32 %v1708, %v1896
  %v1898 = vrcp.pop %v1799
  %v1899 = vmul.f32 %v1710, %v1898
  %v1900 = vrcp.pop %v1800
  %v1901 = vmul.f32 %v1712, %v1900
  %v1902 = vrcp.pop %v1801
  %v1903 = vmul.f32 %v1714, %v1902
  %v1904 = vrcp.pop %v1802
  %v1905 = vmul.f32 %v1716, %v1904
  %v1906 = vrcp.pop %v1803
  %v1907 = vmul.f32 %v1718, %v1906
  %v1908 = vrcp.pop %v1804
  %v1909 = vmul.f32 %v1720, %v1908
  %v1910 = vrcp.pop %v1805
  %v1911 = vmul.f32 %v1722, %v1910
  %v1912 = vrcp.pop %v1806
  %v1913 = vmul.f32 %v1724, %v1912
  %v1914 = vrcp.pop %v1807
  %v1915 = vmul.f32 %v1726, %v1914
  %v1916 = vrcp.pop %v1808
  %v1917 = vmul.f32 %v1728, %v1916
  %v1918 = vrcp.pop %v1809
  %v1919 = vmul.f32 %v1730, %v1918
  %v1920 = vrcp.pop %v1810
  %v1921 = vmul.f32 %v1732, %v1920
  %v1922 = vrcp.pop %v1811
  %v1923 = vmul.f32 %v1734, %v1922
  %v1924 = vrcp.pop %v1812
  %v1925 = vmul.f32 %v1736, %v1924
  %v1926 = vrcp.pop %v1813
  %v1927 = vmul.f32 %v1738, %v1926
  %v1928 = vrcp.pop %v1814
  %v1929 = vmul.f32 %v1740, %v1928
  %v1930 = vrcp.pop %v1815
  %v1931 = vmul.f32 %v1742, %v1930
  %v1932 = vrcp.pop %v1816
  %v1933 = vmul.f32 %v1744, %v1932
  %v1934 = vrcp.pop %v1817
  %v1935 = vmul.f32 %v1746, %v1934
  %v1936 = vrcp.pop %v1818
  %v1937 = vmul.f32 %v1748, %v1936
  %v1938 = vrcp.pop %v1819
  %v1939 = vmul.f32 %v1750, %v1938
  %v1940 = vrcp.pop %v1820
  %v1941 = vmul.f32 %v1752, %v1940
  %v1942 = vrcp.pop %v1821
  %v1943 = vmul.f32 %v1754, %v1942
  %v1944 = vrcp.pop %v1822
  %v1945 = vmul.f32 %v1756, %v1944
  %v1946 = vrcp.pop %v1823
  %v1947 = vmul.f32 %v1758, %v1946
  %v1948 = vrcp.pop %v1824
  %v1949 = vmul.f32 %v1760, %v1948
  %v1950 = vrcp.pop %v1825
  %v1951 = vmul.f32 %v1762, %v1950
  %vm1952 = vcmask 7168
  %1953 = vst.msk [vmem:[%s5] sm:$0xff] %vm1952, %v1827
  %1954 = vst.msk [vmem:[%s5 + $0x8] sm:$0xff] %vm1952, %v1829
  %1955 = vst.msk [vmem:[%s5 + $0x10] sm:$0xff] %vm1952, %v1831
  %1956 = vst.msk [vmem:[%s5 + $0x18] sm:$0xff] %vm1952, %v1833
  %1957 = vst.msk [vmem:[%s5 + $0x20] sm:$0xff] %vm1952, %v1835
  %1958 = vst.msk [vmem:[%s5 + $0x28] sm:$0xff] %vm1952, %v1837
  %1959 = vst.msk [vmem:[%s5 + $0x30] sm:$0xff] %vm1952, %v1839
  %1960 = vst.msk [vmem:[%s5 + $0x38] sm:$0xff] %vm1952, %v1841
  %1961 = vst.msk [vmem:[%s5 + $0x40] sm:$0xff] %vm1952, %v1843
  %1962 = vst.msk [vmem:[%s5 + $0x48] sm:$0xff] %vm1952, %v1845
  %1963 = vst.msk [vmem:[%s5 + $0x50] sm:$0xff] %vm1952, %v1847
  %1964 = vst.msk [vmem:[%s5 + $0x58] sm:$0xff] %vm1952, %v1849
  %1965 = vst.msk [vmem:[%s5 + $0x60] sm:$0xff] %vm1952, %v1851
  %1966 = vst.msk [vmem:[%s5 + $0x68] sm:$0xff] %vm1952, %v1853
  %1967 = vst.msk [vmem:[%s5 + $0x70] sm:$0xff] %vm1952, %v1855
  %1968 = vst.msk [vmem:[%s5 + $0x78] sm:$0xff] %vm1952, %v1857
  %1969 = vst.msk [vmem:[%s5 + $0x80] sm:$0xff] %vm1952, %v1859
  %1970 = vst.msk [vmem:[%s5 + $0x88] sm:$0xff] %vm1952, %v1861
  %1971 = vst.msk [vmem:[%s5 + $0x90] sm:$0xff] %vm1952, %v1863
  %1972 = vst.msk [vmem:[%s5 + $0x98] sm:$0xff] %vm1952, %v1865
  %1973 = vst.msk [vmem:[%s5 + $0xa0] sm:$0xff] %vm1952, %v1867
  %1974 = vst.msk [vmem:[%s5 + $0xa8] sm:$0xff] %vm1952, %v1869
  %1975 = vst.msk [vmem:[%s5 + $0xb0] sm:$0xff] %vm1952, %v1871
  %1976 = vst.msk [vmem:[%s5 + $0xb8] sm:$0xff] %vm1952, %v1873
  %1977 = vst.msk [vmem:[%s5 + $0xc0] sm:$0xff] %vm1952, %v1875
  %1978 = vst.msk [vmem:[%s5 + $0xc8] sm:$0xff] %vm1952, %v1877
  %1979 = vst.msk [vmem:[%s5 + $0xd0] sm:$0xff] %vm1952, %v1879
  %1980 = vst.msk [vmem:[%s5 + $0xd8] sm:$0xff] %vm1952, %v1881
  %1981 = vst.msk [vmem:[%s5 + $0xe0] sm:$0xff] %vm1952, %v1883
  %1982 = vst.msk [vmem:[%s5 + $0xe8] sm:$0xff] %vm1952, %v1885
  %1983 = vst.msk [vmem:[%s5 + $0xf0] sm:$0xff] %vm1952, %v1887
  %1984 = vst.msk [vmem:[%s5 + $0xf8] sm:$0xff] %vm1952, %v1889
  %1985 = vst.msk [vmem:[%s5 + $0x100] sm:$0xff] %vm1952, %v1891
  %1986 = vst.msk [vmem:[%s5 + $0x108] sm:$0xff] %vm1952, %v1893
  %1987 = vst.msk [vmem:[%s5 + $0x110] sm:$0xff] %vm1952, %v1895
  %1988 = vst.msk [vmem:[%s5 + $0x118] sm:$0xff] %vm1952, %v1897
  %1989 = vst.msk [vmem:[%s5 + $0x120] sm:$0xff] %vm1952, %v1899
  %1990 = vst.msk [vmem:[%s5 + $0x128] sm:$0xff] %vm1952, %v1901
  %1991 = vst.msk [vmem:[%s5 + $0x130] sm:$0xff] %vm1952, %v1903
  %1992 = vst.msk [vmem:[%s5 + $0x138] sm:$0xff] %vm1952, %v1905
  %1993 = vst.msk [vmem:[%s5 + $0x140] sm:$0xff] %vm1952, %v1907
  %1994 = vst.msk [vmem:[%s5 + $0x148] sm:$0xff] %vm1952, %v1909
  %1995 = vst.msk [vmem:[%s5 + $0x150] sm:$0xff] %vm1952, %v1911
  %1996 = vst.msk [vmem:[%s5 + $0x158] sm:$0xff] %vm1952, %v1913
  %1997 = vst.msk [vmem:[%s5 + $0x160] sm:$0xff] %vm1952, %v1915
  %1998 = vst.msk [vmem:[%s5 + $0x168] sm:$0xff] %vm1952, %v1917
  %1999 = vst.msk [vmem:[%s5 + $0x170] sm:$0xff] %vm1952, %v1919
  %2000 = vst.msk [vmem:[%s5 + $0x178] sm:$0xff] %vm1952, %v1921
  %2001 = vst.msk [vmem:[%s5 + $0x180] sm:$0xff] %vm1952, %v1923
  %2002 = vst.msk [vmem:[%s5 + $0x188] sm:$0xff] %vm1952, %v1925
  %2003 = vst.msk [vmem:[%s5 + $0x190] sm:$0xff] %vm1952, %v1927
  %2004 = vst.msk [vmem:[%s5 + $0x198] sm:$0xff] %vm1952, %v1929
  %2005 = vst.msk [vmem:[%s5 + $0x1a0] sm:$0xff] %vm1952, %v1931
  %2006 = vst.msk [vmem:[%s5 + $0x1a8] sm:$0xff] %vm1952, %v1933
  %2007 = vst.msk [vmem:[%s5 + $0x1b0] sm:$0xff] %vm1952, %v1935
  %2008 = vst.msk [vmem:[%s5 + $0x1b8] sm:$0xff] %vm1952, %v1937
  %2009 = vst.msk [vmem:[%s5 + $0x1c0] sm:$0xff] %vm1952, %v1939
  %2010 = vst.msk [vmem:[%s5 + $0x1c8] sm:$0xff] %vm1952, %v1941
  %2011 = vst.msk [vmem:[%s5 + $0x1d0] sm:$0xff] %vm1952, %v1943
  %2012 = vst.msk [vmem:[%s5 + $0x1d8] sm:$0xff] %vm1952, %v1945
  %2013 = vst.msk [vmem:[%s5 + $0x1e0] sm:$0xff] %vm1952, %v1947
  %2014 = vst.msk [vmem:[%s5 + $0x1e8] sm:$0xff] %vm1952, %v1949
  %2015 = vst.msk [vmem:[%s5 + $0x1f0] sm:$0xff] %vm1952, %v1951
  // Predicated region
  $region22: #{attn_net_gated_forward.1} parent=0 // pred_check
    _
  $region23: #{attn_net_gated_forward.1} parent=0 // pred_check_branch
    %2017 = sbr.rel (0) target = $region25
  $region24: #{attn_net_gated_forward.1} parent=0 // pred_region
    _
  $region25: #{attn_net_gated_forward.1} parent=0 // pred_fallthru
    _
  // Predicated region
  $region26: #{attn_net_gated_forward.1} parent=0 // pred_check
    _
  $region27: #{attn_net_gated_forward.1} parent=0 // pred_check_branch
    %2019 = sbr.rel (0) target = $region29
  $region28: #{attn_net_gated_forward.1} parent=0 // pred_region
    _
  $region29: #{attn_net_gated_forward.1} parent=0 // pred_fallthru
    _

</llo_original>
